<compile_context>
chip_gen: v7x
topology: tpu7x:2x2x1
jax: 0.10.0
libtpu: 0.0.40
codegen_flags: <defaults>
</compile_context>

<pallas_src>
import jax
import jax.numpy as jnp
from jax import lax
from jax.experimental import pallas as pl
from jax.experimental.pallas import tpu as pltpu


# ----------------------------------------------------------------------------
# Pallas kernel: input projection + recurrence (2 layers) + fc head.
# ----------------------------------------------------------------------------
def lstm_fc_kernel(x_ref,     # (T*Bp, I)  f32  time-major flattened input (row = t*Bp + b)
                   wih0_ref,  # (I, 4H)    bf16 layer-0 input->gates   (gate cols i,f,o,g)
                   whh0_ref,  # (H, 4H)    bf16 layer-0 hidden->gates
                   wih1_ref,  # (H, 4H)    bf16 layer-1 input->gates
                   whh1_ref,  # (H, 4H)    bf16 layer-1 hidden->gates
                   b0_ref,    # (1, 4H)    f32  layer-0 bias (b_ih + b_hh)
                   b1_ref,    # (1, 4H)    f32  layer-1 bias (b_ih + b_hh)
                   wfc_ref,   # (H, Op)    bf16 fc weight (transposed, lane-padded)
                   bfc_ref,   # (1, Op)    f32  fc bias (lane-padded)
                   out_ref,   # (Bp, Op)   f32
                   xg_ref):   # (T*Bp, 4H) f32  VMEM scratch: layer-0 input gates
    H = whh0_ref.shape[0]
    Bp = out_ref.shape[0]
    T = x_ref.shape[0] // Bp

    # Layer-0 input projection for ALL timesteps: one bf16 MXU pass, off the
    # recurrence critical path (hides under step 0).
    xg_ref[...] = (jnp.dot(x_ref[...].astype(jnp.bfloat16), wih0_ref[...],
                           preferred_element_type=jnp.float32)
                   + b0_ref[...])

    # Hoist the tiny (1,4H)->(Bp,4H) bias broadcast once (2 vregs); weight
    # tensors deliberately stay in VMEM refs (no hoist -> no spills).
    b1b = jnp.broadcast_to(b1_ref[...], (Bp, 4 * H))

    def cell(gates, c_prev):
        # Gate columns ordered (i, f, o, g): one sigmoid slab, one tanh slab.
        sig = jax.nn.sigmoid(gates[:, :3 * H])
        g_g = jnp.tanh(gates[:, 3 * H:])
        i_g = sig[:, 0 * H:1 * H]
        f_g = sig[:, 1 * H:2 * H]
        o_g = sig[:, 2 * H:3 * H]
        c_new = f_g * c_prev + i_g * g_g
        h_new = o_g * jnp.tanh(c_new)
        return h_new, c_new

    def step(t, carry):
        h0, c0, h1, c1 = carry
        # Layer-1 recurrent term depends only on the PREVIOUS step's h1 ->
        # issue it first so its MXU push overlaps this step's layer-0 work.
        g1_rec = jnp.dot(h1.astype(jnp.bfloat16), whh1_ref[...],
                         preferred_element_type=jnp.float32)
        # Layer 0: precomputed input gates + recurrent matmul.
        row = pl.multiple_of(t * Bp, Bp)
        g0 = xg_ref[pl.ds(row, Bp), :] + jnp.dot(
            h0.astype(jnp.bfloat16), whh0_ref[...],
            preferred_element_type=jnp.float32)
        h0, c0 = cell(g0, c0)
        # Layer 1: split matmuls (no per-step concat on the serial path).
        g1 = g1_rec + jnp.dot(h0.astype(jnp.bfloat16), wih1_ref[...],
                              preferred_element_type=jnp.float32) + b1b
        h1, c1 = cell(g1, c1)
        return (h0, c0, h1, c1)

    zeros = jnp.zeros((Bp, H), jnp.float32)
    # Register-carried state; T is static -> fully unrolled for LLO scheduling.
    _, _, h1, _ = lax.fori_loop(0, T, step, (zeros, zeros, zeros, zeros),
                                unroll=True)

    # fc head on the last-timestep hidden of the top layer (lane-dense store).
    out_ref[...] = (jnp.dot(h1.astype(jnp.bfloat16), wfc_ref[...],
                            preferred_element_type=jnp.float32)
                    + bfc_ref[...]).astype(out_ref.dtype)


# ----------------------------------------------------------------------------
# Wrapper: layout plumbing only (transpose / pad / flatten) + pallas_call.
# ----------------------------------------------------------------------------
def lstm_model_forward(x, kp, *, output_size):
    """x: (B, T, I) batch-first (PyTorch convention). Returns (B, output_size)."""
    B, T, I = x.shape
    H = kp["whh0"].shape[0]
    Op = kp["wfc"].shape[1]          # lane-padded fc width
    Bp = ((B + 7) // 8) * 8          # sublane-padded batch

    # Time-major, batch padded to a sublane multiple, flattened so row t*Bp + b
    # holds (t, b).  Pure layout plumbing; all compute happens in the kernel.
    x_tm = jnp.transpose(x, (1, 0, 2))
    x_tm = jnp.pad(x_tm, ((0, 0), (0, Bp - B), (0, 0)))
    x_flat = x_tm.reshape(T * Bp, I)

    vmem = pl.BlockSpec(memory_space=pltpu.MemorySpace.VMEM)
    out = pl.pallas_call(
        lstm_fc_kernel,
        out_shape=jax.ShapeDtypeStruct((Bp, Op), jnp.float32),
        in_specs=[vmem] * 9,
        out_specs=vmem,
        scratch_shapes=[pltpu.VMEM((T * Bp, 4 * H), jnp.float32)],
    )(x_flat, kp["wih0"], kp["whh0"], kp["wih1"], kp["whh1"],
      kp["b0"], kp["b1"], kp["wfc"], kp["bfc"])
    return out[:B, :output_size]


# ----------------------------------------------------------------------------
# Parameters: torch-shaped init + packing into the kernel layout.
# ----------------------------------------------------------------------------
def init_torch_params(key, input_size, hidden_size, output_size):
    """Deterministic init with PyTorch parameter shapes (gate order i, f, g, o)."""
    H = hidden_size
    ks = jax.random.split(key, 10)
    bound = 1.0 / jnp.sqrt(jnp.float32(H))

    def u(k, shape):
        return jax.random.uniform(k, shape, jnp.float32, -bound, bound)

    return dict(
        w_ih_l0=u(ks[0], (4 * H, input_size)),
        w_hh_l0=u(ks[1], (4 * H, H)),
        b_ih_l0=u(ks[2], (4 * H,)),
        b_hh_l0=u(ks[3], (4 * H,)),
        w_ih_l1=u(ks[4], (4 * H, H)),
        w_hh_l1=u(ks[5], (4 * H, H)),
        b_ih_l1=u(ks[6], (4 * H,)),
        b_hh_l1=u(ks[7], (4 * H,)),
        w_fc=u(ks[8], (output_size, H)),
        b_fc=u(ks[9], (output_size,)),
    )


def _reorder_ifgo_to_ifog(a, H):
    """Last-axis gate columns: torch order (i, f, g, o) -> kernel order (i, f, o, g)."""
    return jnp.concatenate(
        [a[..., 0:2 * H], a[..., 3 * H:4 * H], a[..., 2 * H:3 * H]], axis=-1)


def pack_params(tp, hidden_size):
    """Torch params -> kernel layout: transposed weights, gate columns
    reordered (i,f,o,g), biases combined (f32), matmul weights pre-cast to
    bf16, fc weight/bias lane-padded to a multiple of 128 columns."""
    H = hidden_size
    r = lambda a: _reorder_ifgo_to_ifog(a, H)
    O = tp["w_fc"].shape[0]
    Op = -(-O // 128) * 128

    wfc = jnp.pad(tp["w_fc"].T, ((0, 0), (0, Op - O)))            # (H, Op)
    bfc = jnp.pad(tp["b_fc"].reshape(1, -1), ((0, 0), (0, Op - O)))  # (1, Op)

    return dict(
        wih0=r(tp["w_ih_l0"].T).astype(jnp.bfloat16),              # (I, 4H)
        whh0=r(tp["w_hh_l0"].T).astype(jnp.bfloat16),              # (H, 4H)
        wih1=r(tp["w_ih_l1"].T).astype(jnp.bfloat16),              # (H, 4H)
        whh1=r(tp["w_hh_l1"].T).astype(jnp.bfloat16),              # (H, 4H)
        b0=r((tp["b_ih_l0"] + tp["b_hh_l0"]).reshape(1, 4 * H)),   # (1, 4H) f32
        b1=r((tp["b_ih_l1"] + tp["b_hh_l1"]).reshape(1, 4 * H)),   # (1, 4H) f32
        wfc=wfc.astype(jnp.bfloat16),                              # (H, Op)
        bfc=bfc,                                                   # (1, Op) f32
    )


# ----------------------------------------------------------------------------
# Pure-JAX f32 reference in the original torch layout (correctness check).
# ----------------------------------------------------------------------------
def reference_forward(x, tp, hidden_size):
    B, T, _ = x.shape
    H = hidden_size

    def cell(x_t, h, c, w_ih, w_hh, b_ih, b_hh):
        g = (jnp.dot(x_t, w_ih.T, precision=lax.Precision.HIGHEST)
             + jnp.dot(h, w_hh.T, precision=lax.Precision.HIGHEST)
             + b_ih + b_hh)
        i = jax.nn.sigmoid(g[:, 0:H])
        f = jax.nn.sigmoid(g[:, H:2 * H])
        gg = jnp.tanh(g[:, 2 * H:3 * H])
        o = jax.nn.sigmoid(g[:, 3 * H:4 * H])
        c = f * c + i * gg
        h = o * jnp.tanh(c)
        return h, c

    h0 = c0 = h1 = c1 = jnp.zeros((B, H), jnp.float32)
    for t in range(T):
        h0, c0 = cell(x[:, t], h0, c0, tp["w_ih_l0"], tp["w_hh_l0"],
                      tp["b_ih_l0"], tp["b_hh_l0"])
        h1, c1 = cell(h0, h1, c1, tp["w_ih_l1"], tp["w_hh_l1"],
                      tp["b_ih_l1"], tp["b_hh_l1"])
    return jnp.dot(h1, tp["w_fc"].T, precision=lax.Precision.HIGHEST) + tp["b_fc"]


if __name__ == "__main__":
    # Shapes consistent with the module:
    #   input_size = features.shape[1] + 1 -> pick 8
    #   hidden_size = 64, num_layers = 2, output_size = pred_length = 24
    B, T, I, H, O = 4, 8, 8, 64, 24

    key = jax.random.PRNGKey(0)
    kx, kw = jax.random.split(key)
    x = jax.random.normal(kx, (B, T, I), jnp.float32)

    tparams = init_torch_params(kw, I, H, O)
    kparams = pack_params(tparams, H)

    fwd = jax.jit(lstm_model_forward, static_argnames=("output_size",))
    out = fwd(x, kparams, output_size=O)
    jax.block_until_ready(out)
    assert out.shape == (B, O), out.shape

    ref = reference_forward(x, tparams, H)
    # Tolerance relaxed vs. the f32 reference: recurrent/fc matmul operands run
    # in bf16 (f32 accumulation) per the perf review; gates are saturating so
    # the observed error stays well inside this bound.
    max_err = float(jnp.max(jnp.abs(out - ref)))
    assert jnp.allclose(out, ref, atol=2e-2, rtol=2e-2), max_err

    print("KERNEL_OK")
</pallas_src>

<mosaic_0001>
module attributes {stable_mosaic.version = 11 : i64} {
  func.func @lstm_fc_kernel(%arg0: memref<64x8xf32, #tpu.memory_space<vmem>>, %arg1: memref<8x256xbf16, #tpu.memory_space<vmem>>, %arg2: memref<64x256xbf16, #tpu.memory_space<vmem>>, %arg3: memref<64x256xbf16, #tpu.memory_space<vmem>>, %arg4: memref<64x256xbf16, #tpu.memory_space<vmem>>, %arg5: memref<1x256xf32, #tpu.memory_space<vmem>>, %arg6: memref<1x256xf32, #tpu.memory_space<vmem>>, %arg7: memref<64x128xbf16, #tpu.memory_space<vmem>>, %arg8: memref<1x128xf32, #tpu.memory_space<vmem>>, %arg9: memref<8x128xf32, #tpu.memory_space<vmem>>, %arg10: memref<64x256xf32, #tpu.memory_space<vmem>>) attributes {dimension_semantics = [], scalar_prefetch = 0 : i64, scratch_operands = 1 : i64, tpu.core_type = #tpu.core_type<tc>} {
    %c0 = arith.constant 0 : index
    %c0_0 = arith.constant 0 : index
    %0 = vector.load %arg0[%c0, %c0_0] : memref<64x8xf32, #tpu.memory_space<vmem>>, vector<64x8xf32>
    %1 = arith.truncf %0 : vector<64x8xf32> to vector<64x8xbf16>
    %c0_1 = arith.constant 0 : index
    %c0_2 = arith.constant 0 : index
    %2 = vector.load %arg1[%c0_1, %c0_2] : memref<8x256xbf16, #tpu.memory_space<vmem>>, vector<8x256xbf16>
    %cst = arith.constant dense<0.000000e+00> : vector<64x256xf32>
    %3 = tpu.matmul %1, %2, %cst {dimension_numbers = #tpu.dot_dimension_numbers<[1], [0], [0], [1], [0, 0, 1, 1], [], []>} : vector<64x8xbf16>, vector<8x256xbf16>, vector<64x256xf32> -> vector<64x256xf32>
    %c0_3 = arith.constant 0 : index
    %c0_4 = arith.constant 0 : index
    %4 = vector.load %arg5[%c0_3, %c0_4] : memref<1x256xf32, #tpu.memory_space<vmem>>, vector<1x256xf32>
    %5 = vector.broadcast %4 : vector<1x256xf32> to vector<64x256xf32>
    %6 = arith.addf %3, %5 : vector<64x256xf32>
    %c0_5 = arith.constant 0 : index
    %c0_6 = arith.constant 0 : index
    %7 = vector.load %arg10[%c0_5, %c0_6] : memref<64x256xf32, #tpu.memory_space<vmem>>, vector<64x256xf32>
    tpu.vector_store %arg10[%c0_5, %c0_6], %6 {strides = array<i32>} : memref<64x256xf32, #tpu.memory_space<vmem>>, vector<64x256xf32>,
    %c0_7 = arith.constant 0 : index
    %c0_8 = arith.constant 0 : index
    %8 = vector.load %arg6[%c0_7, %c0_8] : memref<1x256xf32, #tpu.memory_space<vmem>>, vector<1x256xf32>
    %9 = vector.shape_cast %8 : vector<1x256xf32> to vector<1x256xf32>
    %10 = vector.broadcast %9 : vector<1x256xf32> to vector<8x256xf32>
    %cst_9 = arith.constant 0.000000e+00 : f32
    %11 = vector.broadcast %cst_9 : f32 to vector<8x64xf32>
    %c0_i32 = arith.constant 0 : i32
    %12 = arith.truncf %11 : vector<8x64xf32> to vector<8x64xbf16>
    %c0_10 = arith.constant 0 : index
    %c0_11 = arith.constant 0 : index
    %13 = vector.load %arg4[%c0_10, %c0_11] : memref<64x256xbf16, #tpu.memory_space<vmem>>, vector<64x256xbf16>
    %cst_12 = arith.constant dense<0.000000e+00> : vector<8x256xf32>
    %14 = tpu.matmul %12, %13, %cst_12 {dimension_numbers = #tpu.dot_dimension_numbers<[1], [0], [0], [1], [0, 0, 1, 1], [], []>} : vector<8x64xbf16>, vector<64x256xbf16>, vector<8x256xf32> -> vector<8x256xf32>
    %c8_i32 = arith.constant 8 : i32
    %15 = arith.muli %c0_i32, %c8_i32 : i32
    %16 = tpu.assume_multiple %15, 8 : i32
    %17 = arith.index_cast %16 : i32 to index
    %c0_13 = arith.constant 0 : index
    %18 = vector.load %arg10[%17, %c0_13] : memref<64x256xf32, #tpu.memory_space<vmem>>, vector<8x256xf32>
    %19 = arith.truncf %11 : vector<8x64xf32> to vector<8x64xbf16>
    %c0_14 = arith.constant 0 : index
    %c0_15 = arith.constant 0 : index
    %20 = vector.load %arg2[%c0_14, %c0_15] : memref<64x256xbf16, #tpu.memory_space<vmem>>, vector<64x256xbf16>
    %cst_16 = arith.constant dense<0.000000e+00> : vector<8x256xf32>
    %21 = tpu.matmul %19, %20, %cst_16 {dimension_numbers = #tpu.dot_dimension_numbers<[1], [0], [0], [1], [0, 0, 1, 1], [], []>} : vector<8x64xbf16>, vector<64x256xbf16>, vector<8x256xf32> -> vector<8x256xf32>
    %22 = arith.addf %18, %21 : vector<8x256xf32>
    %23 = vector.extract_strided_slice %22 {offsets = [0, 0], sizes = [8, 192], strides = [1, 1]} : vector<8x256xf32> to vector<8x192xf32>
    %24 = arith.negf %23 : vector<8x192xf32>
    %25 = math.exp %24 : vector<8x192xf32>
    %cst_17 = arith.constant 1.000000e+00 : f32
    %26 = vector.broadcast %cst_17 : f32 to vector<8x192xf32>
    %27 = arith.addf %26, %25 : vector<8x192xf32>
    %28 = arith.divf %26, %27 : vector<8x192xf32>
    %29 = vector.extract_strided_slice %22 {offsets = [0, 192], sizes = [8, 64], strides = [1, 1]} : vector<8x256xf32> to vector<8x64xf32>
    %30 = math.tanh %29 : vector<8x64xf32>
    %31 = vector.extract_strided_slice %28 {offsets = [0, 0], sizes = [8, 64], strides = [1, 1]} : vector<8x192xf32> to vector<8x64xf32>
    %32 = vector.extract_strided_slice %28 {offsets = [0, 64], sizes = [8, 64], strides = [1, 1]} : vector<8x192xf32> to vector<8x64xf32>
    %33 = vector.extract_strided_slice %28 {offsets = [0, 128], sizes = [8, 64], strides = [1, 1]} : vector<8x192xf32> to vector<8x64xf32>
    %34 = arith.mulf %32, %11 : vector<8x64xf32>
    %35 = arith.mulf %31, %30 : vector<8x64xf32>
    %36 = arith.addf %34, %35 : vector<8x64xf32>
    %37 = math.tanh %36 : vector<8x64xf32>
    %38 = arith.mulf %33, %37 : vector<8x64xf32>
    %39 = arith.truncf %38 : vector<8x64xf32> to vector<8x64xbf16>
    %c0_18 = arith.constant 0 : index
    %c0_19 = arith.constant 0 : index
    %40 = vector.load %arg3[%c0_18, %c0_19] : memref<64x256xbf16, #tpu.memory_space<vmem>>, vector<64x256xbf16>
    %cst_20 = arith.constant dense<0.000000e+00> : vector<8x256xf32>
    %41 = tpu.matmul %39, %40, %cst_20 {dimension_numbers = #tpu.dot_dimension_numbers<[1], [0], [0], [1], [0, 0, 1, 1], [], []>} : vector<8x64xbf16>, vector<64x256xbf16>, vector<8x256xf32> -> vector<8x256xf32>
    %42 = arith.addf %14, %41 : vector<8x256xf32>
    %43 = arith.addf %42, %10 : vector<8x256xf32>
    %44 = vector.extract_strided_slice %43 {offsets = [0, 0], sizes = [8, 192], strides = [1, 1]} : vector<8x256xf32> to vector<8x192xf32>
    %45 = arith.negf %44 : vector<8x192xf32>
    %46 = math.exp %45 : vector<8x192xf32>
    %cst_21 = arith.constant 1.000000e+00 : f32
    %47 = vector.broadcast %cst_21 : f32 to vector<8x192xf32>
    %48 = arith.addf %47, %46 : vector<8x192xf32>
    %49 = arith.divf %47, %48 : vector<8x192xf32>
    %50 = vector.extract_strided_slice %43 {offsets = [0, 192], sizes = [8, 64], strides = [1, 1]} : vector<8x256xf32> to vector<8x64xf32>
    %51 = math.tanh %50 : vector<8x64xf32>
    %52 = vector.extract_strided_slice %49 {offsets = [0, 0], sizes = [8, 64], strides = [1, 1]} : vector<8x192xf32> to vector<8x64xf32>
    %53 = vector.extract_strided_slice %49 {offsets = [0, 64], sizes = [8, 64], strides = [1, 1]} : vector<8x192xf32> to vector<8x64xf32>
    %54 = vector.extract_strided_slice %49 {offsets = [0, 128], sizes = [8, 64], strides = [1, 1]} : vector<8x192xf32> to vector<8x64xf32>
    %55 = arith.mulf %53, %11 : vector<8x64xf32>
    %56 = arith.mulf %52, %51 : vector<8x64xf32>
    %57 = arith.addf %55, %56 : vector<8x64xf32>
    %58 = math.tanh %57 : vector<8x64xf32>
    %59 = arith.mulf %54, %58 : vector<8x64xf32>
    %c1_i32 = arith.constant 1 : i32
    %60 = arith.truncf %59 : vector<8x64xf32> to vector<8x64xbf16>
    %c0_22 = arith.constant 0 : index
    %c0_23 = arith.constant 0 : index
    %61 = vector.load %arg4[%c0_22, %c0_23] : memref<64x256xbf16, #tpu.memory_space<vmem>>, vector<64x256xbf16>
    %cst_24 = arith.constant dense<0.000000e+00> : vector<8x256xf32>
    %62 = tpu.matmul %60, %61, %cst_24 {dimension_numbers = #tpu.dot_dimension_numbers<[1], [0], [0], [1], [0, 0, 1, 1], [], []>} : vector<8x64xbf16>, vector<64x256xbf16>, vector<8x256xf32> -> vector<8x256xf32>
    %c8_i32_25 = arith.constant 8 : i32
    %63 = arith.muli %c1_i32, %c8_i32_25 : i32
    %64 = tpu.assume_multiple %63, 8 : i32
    %65 = arith.index_cast %64 : i32 to index
    %c0_26 = arith.constant 0 : index
    %66 = vector.load %arg10[%65, %c0_26] : memref<64x256xf32, #tpu.memory_space<vmem>>, vector<8x256xf32>
    %67 = arith.truncf %38 : vector<8x64xf32> to vector<8x64xbf16>
    %c0_27 = arith.constant 0 : index
    %c0_28 = arith.constant 0 : index
    %68 = vector.load %arg2[%c0_27, %c0_28] : memref<64x256xbf16, #tpu.memory_space<vmem>>, vector<64x256xbf16>
    %cst_29 = arith.constant dense<0.000000e+00> : vector<8x256xf32>
    %69 = tpu.matmul %67, %68, %cst_29 {dimension_numbers = #tpu.dot_dimension_numbers<[1], [0], [0], [1], [0, 0, 1, 1], [], []>} : vector<8x64xbf16>, vector<64x256xbf16>, vector<8x256xf32> -> vector<8x256xf32>
    %70 = arith.addf %66, %69 : vector<8x256xf32>
    %71 = vector.extract_strided_slice %70 {offsets = [0, 0], sizes = [8, 192], strides = [1, 1]} : vector<8x256xf32> to vector<8x192xf32>
    %72 = arith.negf %71 : vector<8x192xf32>
    %73 = math.exp %72 : vector<8x192xf32>
    %cst_30 = arith.constant 1.000000e+00 : f32
    %74 = vector.broadcast %cst_30 : f32 to vector<8x192xf32>
    %75 = arith.addf %74, %73 : vector<8x192xf32>
    %76 = arith.divf %74, %75 : vector<8x192xf32>
    %77 = vector.extract_strided_slice %70 {offsets = [0, 192], sizes = [8, 64], strides = [1, 1]} : vector<8x256xf32> to vector<8x64xf32>
    %78 = math.tanh %77 : vector<8x64xf32>
    %79 = vector.extract_strided_slice %76 {offsets = [0, 0], sizes = [8, 64], strides = [1, 1]} : vector<8x192xf32> to vector<8x64xf32>
    %80 = vector.extract_strided_slice %76 {offsets = [0, 64], sizes = [8, 64], strides = [1, 1]} : vector<8x192xf32> to vector<8x64xf32>
    %81 = vector.extract_strided_slice %76 {offsets = [0, 128], sizes = [8, 64], strides = [1, 1]} : vector<8x192xf32> to vector<8x64xf32>
    %82 = arith.mulf %80, %36 : vector<8x64xf32>
    %83 = arith.mulf %79, %78 : vector<8x64xf32>
    %84 = arith.addf %82, %83 : vector<8x64xf32>
    %85 = math.tanh %84 : vector<8x64xf32>
    %86 = arith.mulf %81, %85 : vector<8x64xf32>
    %87 = arith.truncf %86 : vector<8x64xf32> to vector<8x64xbf16>
    %c0_31 = arith.constant 0 : index
    %c0_32 = arith.constant 0 : index
    %88 = vector.load %arg3[%c0_31, %c0_32] : memref<64x256xbf16, #tpu.memory_space<vmem>>, vector<64x256xbf16>
    %cst_33 = arith.constant dense<0.000000e+00> : vector<8x256xf32>
    %89 = tpu.matmul %87, %88, %cst_33 {dimension_numbers = #tpu.dot_dimension_numbers<[1], [0], [0], [1], [0, 0, 1, 1], [], []>} : vector<8x64xbf16>, vector<64x256xbf16>, vector<8x256xf32> -> vector<8x256xf32>
    %90 = arith.addf %62, %89 : vector<8x256xf32>
    %91 = arith.addf %90, %10 : vector<8x256xf32>
    %92 = vector.extract_strided_slice %91 {offsets = [0, 0], sizes = [8, 192], strides = [1, 1]} : vector<8x256xf32> to vector<8x192xf32>
    %93 = arith.negf %92 : vector<8x192xf32>
    %94 = math.exp %93 : vector<8x192xf32>
    %cst_34 = arith.constant 1.000000e+00 : f32
    %95 = vector.broadcast %cst_34 : f32 to vector<8x192xf32>
    %96 = arith.addf %95, %94 : vector<8x192xf32>
    %97 = arith.divf %95, %96 : vector<8x192xf32>
    %98 = vector.extract_strided_slice %91 {offsets = [0, 192], sizes = [8, 64], strides = [1, 1]} : vector<8x256xf32> to vector<8x64xf32>
    %99 = math.tanh %98 : vector<8x64xf32>
    %100 = vector.extract_strided_slice %97 {offsets = [0, 0], sizes = [8, 64], strides = [1, 1]} : vector<8x192xf32> to vector<8x64xf32>
    %101 = vector.extract_strided_slice %97 {offsets = [0, 64], sizes = [8, 64], strides = [1, 1]} : vector<8x192xf32> to vector<8x64xf32>
    %102 = vector.extract_strided_slice %97 {offsets = [0, 128], sizes = [8, 64], strides = [1, 1]} : vector<8x192xf32> to vector<8x64xf32>
    %103 = arith.mulf %101, %57 : vector<8x64xf32>
    %104 = arith.mulf %100, %99 : vector<8x64xf32>
    %105 = arith.addf %103, %104 : vector<8x64xf32>
    %106 = math.tanh %105 : vector<8x64xf32>
    %107 = arith.mulf %102, %106 : vector<8x64xf32>
    %c2_i32 = arith.constant 2 : i32
    %108 = arith.truncf %107 : vector<8x64xf32> to vector<8x64xbf16>
    %c0_35 = arith.constant 0 : index
    %c0_36 = arith.constant 0 : index
    %109 = vector.load %arg4[%c0_35, %c0_36] : memref<64x256xbf16, #tpu.memory_space<vmem>>, vector<64x256xbf16>
    %cst_37 = arith.constant dense<0.000000e+00> : vector<8x256xf32>
    %110 = tpu.matmul %108, %109, %cst_37 {dimension_numbers = #tpu.dot_dimension_numbers<[1], [0], [0], [1], [0, 0, 1, 1], [], []>} : vector<8x64xbf16>, vector<64x256xbf16>, vector<8x256xf32> -> vector<8x256xf32>
    %c8_i32_38 = arith.constant 8 : i32
    %111 = arith.muli %c2_i32, %c8_i32_38 : i32
    %112 = tpu.assume_multiple %111, 8 : i32
    %113 = arith.index_cast %112 : i32 to index
    %c0_39 = arith.constant 0 : index
    %114 = vector.load %arg10[%113, %c0_39] : memref<64x256xf32, #tpu.memory_space<vmem>>, vector<8x256xf32>
    %115 = arith.truncf %86 : vector<8x64xf32> to vector<8x64xbf16>
    %c0_40 = arith.constant 0 : index
    %c0_41 = arith.constant 0 : index
    %116 = vector.load %arg2[%c0_40, %c0_41] : memref<64x256xbf16, #tpu.memory_space<vmem>>, vector<64x256xbf16>
    %cst_42 = arith.constant dense<0.000000e+00> : vector<8x256xf32>
    %117 = tpu.matmul %115, %116, %cst_42 {dimension_numbers = #tpu.dot_dimension_numbers<[1], [0], [0], [1], [0, 0, 1, 1], [], []>} : vector<8x64xbf16>, vector<64x256xbf16>, vector<8x256xf32> -> vector<8x256xf32>
    %118 = arith.addf %114, %117 : vector<8x256xf32>
    %119 = vector.extract_strided_slice %118 {offsets = [0, 0], sizes = [8, 192], strides = [1, 1]} : vector<8x256xf32> to vector<8x192xf32>
    %120 = arith.negf %119 : vector<8x192xf32>
    %121 = math.exp %120 : vector<8x192xf32>
    %cst_43 = arith.constant 1.000000e+00 : f32
    %122 = vector.broadcast %cst_43 : f32 to vector<8x192xf32>
    %123 = arith.addf %122, %121 : vector<8x192xf32>
    %124 = arith.divf %122, %123 : vector<8x192xf32>
    %125 = vector.extract_strided_slice %118 {offsets = [0, 192], sizes = [8, 64], strides = [1, 1]} : vector<8x256xf32> to vector<8x64xf32>
    %126 = math.tanh %125 : vector<8x64xf32>
    %127 = vector.extract_strided_slice %124 {offsets = [0, 0], sizes = [8, 64], strides = [1, 1]} : vector<8x192xf32> to vector<8x64xf32>
    %128 = vector.extract_strided_slice %124 {offsets = [0, 64], sizes = [8, 64], strides = [1, 1]} : vector<8x192xf32> to vector<8x64xf32>
    %129 = vector.extract_strided_slice %124 {offsets = [0, 128], sizes = [8, 64], strides = [1, 1]} : vector<8x192xf32> to vector<8x64xf32>
    %130 = arith.mulf %128, %84 : vector<8x64xf32>
    %131 = arith.mulf %127, %126 : vector<8x64xf32>
    %132 = arith.addf %130, %131 : vector<8x64xf32>
    %133 = math.tanh %132 : vector<8x64xf32>
    %134 = arith.mulf %129, %133 : vector<8x64xf32>
    %135 = arith.truncf %134 : vector<8x64xf32> to vector<8x64xbf16>
    %c0_44 = arith.constant 0 : index
    %c0_45 = arith.constant 0 : index
    %136 = vector.load %arg3[%c0_44, %c0_45] : memref<64x256xbf16, #tpu.memory_space<vmem>>, vector<64x256xbf16>
    %cst_46 = arith.constant dense<0.000000e+00> : vector<8x256xf32>
    %137 = tpu.matmul %135, %136, %cst_46 {dimension_numbers = #tpu.dot_dimension_numbers<[1], [0], [0], [1], [0, 0, 1, 1], [], []>} : vector<8x64xbf16>, vector<64x256xbf16>, vector<8x256xf32> -> vector<8x256xf32>
    %138 = arith.addf %110, %137 : vector<8x256xf32>
    %139 = arith.addf %138, %10 : vector<8x256xf32>
    %140 = vector.extract_strided_slice %139 {offsets = [0, 0], sizes = [8, 192], strides = [1, 1]} : vector<8x256xf32> to vector<8x192xf32>
    %141 = arith.negf %140 : vector<8x192xf32>
    %142 = math.exp %141 : vector<8x192xf32>
    %cst_47 = arith.constant 1.000000e+00 : f32
    %143 = vector.broadcast %cst_47 : f32 to vector<8x192xf32>
    %144 = arith.addf %143, %142 : vector<8x192xf32>
    %145 = arith.divf %143, %144 : vector<8x192xf32>
    %146 = vector.extract_strided_slice %139 {offsets = [0, 192], sizes = [8, 64], strides = [1, 1]} : vector<8x256xf32> to vector<8x64xf32>
    %147 = math.tanh %146 : vector<8x64xf32>
    %148 = vector.extract_strided_slice %145 {offsets = [0, 0], sizes = [8, 64], strides = [1, 1]} : vector<8x192xf32> to vector<8x64xf32>
    %149 = vector.extract_strided_slice %145 {offsets = [0, 64], sizes = [8, 64], strides = [1, 1]} : vector<8x192xf32> to vector<8x64xf32>
    %150 = vector.extract_strided_slice %145 {offsets = [0, 128], sizes = [8, 64], strides = [1, 1]} : vector<8x192xf32> to vector<8x64xf32>
    %151 = arith.mulf %149, %105 : vector<8x64xf32>
    %152 = arith.mulf %148, %147 : vector<8x64xf32>
    %153 = arith.addf %151, %152 : vector<8x64xf32>
    %154 = math.tanh %153 : vector<8x64xf32>
    %155 = arith.mulf %150, %154 : vector<8x64xf32>
    %c3_i32 = arith.constant 3 : i32
    %156 = arith.truncf %155 : vector<8x64xf32> to vector<8x64xbf16>
    %c0_48 = arith.constant 0 : index
    %c0_49 = arith.constant 0 : index
    %157 = vector.load %arg4[%c0_48, %c0_49] : memref<64x256xbf16, #tpu.memory_space<vmem>>, vector<64x256xbf16>
    %cst_50 = arith.constant dense<0.000000e+00> : vector<8x256xf32>
    %158 = tpu.matmul %156, %157, %cst_50 {dimension_numbers = #tpu.dot_dimension_numbers<[1], [0], [0], [1], [0, 0, 1, 1], [], []>} : vector<8x64xbf16>, vector<64x256xbf16>, vector<8x256xf32> -> vector<8x256xf32>
    %c8_i32_51 = arith.constant 8 : i32
    %159 = arith.muli %c3_i32, %c8_i32_51 : i32
    %160 = tpu.assume_multiple %159, 8 : i32
    %161 = arith.index_cast %160 : i32 to index
    %c0_52 = arith.constant 0 : index
    %162 = vector.load %arg10[%161, %c0_52] : memref<64x256xf32, #tpu.memory_space<vmem>>, vector<8x256xf32>
    %163 = arith.truncf %134 : vector<8x64xf32> to vector<8x64xbf16>
    %c0_53 = arith.constant 0 : index
    %c0_54 = arith.constant 0 : index
    %164 = vector.load %arg2[%c0_53, %c0_54] : memref<64x256xbf16, #tpu.memory_space<vmem>>, vector<64x256xbf16>
    %cst_55 = arith.constant dense<0.000000e+00> : vector<8x256xf32>
    %165 = tpu.matmul %163, %164, %cst_55 {dimension_numbers = #tpu.dot_dimension_numbers<[1], [0], [0], [1], [0, 0, 1, 1], [], []>} : vector<8x64xbf16>, vector<64x256xbf16>, vector<8x256xf32> -> vector<8x256xf32>
    %166 = arith.addf %162, %165 : vector<8x256xf32>
    %167 = vector.extract_strided_slice %166 {offsets = [0, 0], sizes = [8, 192], strides = [1, 1]} : vector<8x256xf32> to vector<8x192xf32>
    %168 = arith.negf %167 : vector<8x192xf32>
    %169 = math.exp %168 : vector<8x192xf32>
    %cst_56 = arith.constant 1.000000e+00 : f32
    %170 = vector.broadcast %cst_56 : f32 to vector<8x192xf32>
    %171 = arith.addf %170, %169 : vector<8x192xf32>
    %172 = arith.divf %170, %171 : vector<8x192xf32>
    %173 = vector.extract_strided_slice %166 {offsets = [0, 192], sizes = [8, 64], strides = [1, 1]} : vector<8x256xf32> to vector<8x64xf32>
    %174 = math.tanh %173 : vector<8x64xf32>
    %175 = vector.extract_strided_slice %172 {offsets = [0, 0], sizes = [8, 64], strides = [1, 1]} : vector<8x192xf32> to vector<8x64xf32>
    %176 = vector.extract_strided_slice %172 {offsets = [0, 64], sizes = [8, 64], strides = [1, 1]} : vector<8x192xf32> to vector<8x64xf32>
    %177 = vector.extract_strided_slice %172 {offsets = [0, 128], sizes = [8, 64], strides = [1, 1]} : vector<8x192xf32> to vector<8x64xf32>
    %178 = arith.mulf %176, %132 : vector<8x64xf32>
    %179 = arith.mulf %175, %174 : vector<8x64xf32>
    %180 = arith.addf %178, %179 : vector<8x64xf32>
    %181 = math.tanh %180 : vector<8x64xf32>
    %182 = arith.mulf %177, %181 : vector<8x64xf32>
    %183 = arith.truncf %182 : vector<8x64xf32> to vector<8x64xbf16>
    %c0_57 = arith.constant 0 : index
    %c0_58 = arith.constant 0 : index
    %184 = vector.load %arg3[%c0_57, %c0_58] : memref<64x256xbf16, #tpu.memory_space<vmem>>, vector<64x256xbf16>
    %cst_59 = arith.constant dense<0.000000e+00> : vector<8x256xf32>
    %185 = tpu.matmul %183, %184, %cst_59 {dimension_numbers = #tpu.dot_dimension_numbers<[1], [0], [0], [1], [0, 0, 1, 1], [], []>} : vector<8x64xbf16>, vector<64x256xbf16>, vector<8x256xf32> -> vector<8x256xf32>
    %186 = arith.addf %158, %185 : vector<8x256xf32>
    %187 = arith.addf %186, %10 : vector<8x256xf32>
    %188 = vector.extract_strided_slice %187 {offsets = [0, 0], sizes = [8, 192], strides = [1, 1]} : vector<8x256xf32> to vector<8x192xf32>
    %189 = arith.negf %188 : vector<8x192xf32>
    %190 = math.exp %189 : vector<8x192xf32>
    %cst_60 = arith.constant 1.000000e+00 : f32
    %191 = vector.broadcast %cst_60 : f32 to vector<8x192xf32>
    %192 = arith.addf %191, %190 : vector<8x192xf32>
    %193 = arith.divf %191, %192 : vector<8x192xf32>
    %194 = vector.extract_strided_slice %187 {offsets = [0, 192], sizes = [8, 64], strides = [1, 1]} : vector<8x256xf32> to vector<8x64xf32>
    %195 = math.tanh %194 : vector<8x64xf32>
    %196 = vector.extract_strided_slice %193 {offsets = [0, 0], sizes = [8, 64], strides = [1, 1]} : vector<8x192xf32> to vector<8x64xf32>
    %197 = vector.extract_strided_slice %193 {offsets = [0, 64], sizes = [8, 64], strides = [1, 1]} : vector<8x192xf32> to vector<8x64xf32>
    %198 = vector.extract_strided_slice %193 {offsets = [0, 128], sizes = [8, 64], strides = [1, 1]} : vector<8x192xf32> to vector<8x64xf32>
    %199 = arith.mulf %197, %153 : vector<8x64xf32>
    %200 = arith.mulf %196, %195 : vector<8x64xf32>
    %201 = arith.addf %199, %200 : vector<8x64xf32>
    %202 = math.tanh %201 : vector<8x64xf32>
    %203 = arith.mulf %198, %202 : vector<8x64xf32>
    %c4_i32 = arith.constant 4 : i32
    %204 = arith.truncf %203 : vector<8x64xf32> to vector<8x64xbf16>
    %c0_61 = arith.constant 0 : index
    %c0_62 = arith.constant 0 : index
    %205 = vector.load %arg4[%c0_61, %c0_62] : memref<64x256xbf16, #tpu.memory_space<vmem>>, vector<64x256xbf16>
    %cst_63 = arith.constant dense<0.000000e+00> : vector<8x256xf32>
    %206 = tpu.matmul %204, %205, %cst_63 {dimension_numbers = #tpu.dot_dimension_numbers<[1], [0], [0], [1], [0, 0, 1, 1], [], []>} : vector<8x64xbf16>, vector<64x256xbf16>, vector<8x256xf32> -> vector<8x256xf32>
    %c8_i32_64 = arith.constant 8 : i32
    %207 = arith.muli %c4_i32, %c8_i32_64 : i32
    %208 = tpu.assume_multiple %207, 8 : i32
    %209 = arith.index_cast %208 : i32 to index
    %c0_65 = arith.constant 0 : index
    %210 = vector.load %arg10[%209, %c0_65] : memref<64x256xf32, #tpu.memory_space<vmem>>, vector<8x256xf32>
    %211 = arith.truncf %182 : vector<8x64xf32> to vector<8x64xbf16>
    %c0_66 = arith.constant 0 : index
    %c0_67 = arith.constant 0 : index
    %212 = vector.load %arg2[%c0_66, %c0_67] : memref<64x256xbf16, #tpu.memory_space<vmem>>, vector<64x256xbf16>
    %cst_68 = arith.constant dense<0.000000e+00> : vector<8x256xf32>
    %213 = tpu.matmul %211, %212, %cst_68 {dimension_numbers = #tpu.dot_dimension_numbers<[1], [0], [0], [1], [0, 0, 1, 1], [], []>} : vector<8x64xbf16>, vector<64x256xbf16>, vector<8x256xf32> -> vector<8x256xf32>
    %214 = arith.addf %210, %213 : vector<8x256xf32>
    %215 = vector.extract_strided_slice %214 {offsets = [0, 0], sizes = [8, 192], strides = [1, 1]} : vector<8x256xf32> to vector<8x192xf32>
    %216 = arith.negf %215 : vector<8x192xf32>
    %217 = math.exp %216 : vector<8x192xf32>
    %cst_69 = arith.constant 1.000000e+00 : f32
    %218 = vector.broadcast %cst_69 : f32 to vector<8x192xf32>
    %219 = arith.addf %218, %217 : vector<8x192xf32>
    %220 = arith.divf %218, %219 : vector<8x192xf32>
    %221 = vector.extract_strided_slice %214 {offsets = [0, 192], sizes = [8, 64], strides = [1, 1]} : vector<8x256xf32> to vector<8x64xf32>
    %222 = math.tanh %221 : vector<8x64xf32>
    %223 = vector.extract_strided_slice %220 {offsets = [0, 0], sizes = [8, 64], strides = [1, 1]} : vector<8x192xf32> to vector<8x64xf32>
    %224 = vector.extract_strided_slice %220 {offsets = [0, 64], sizes = [8, 64], strides = [1, 1]} : vector<8x192xf32> to vector<8x64xf32>
    %225 = vector.extract_strided_slice %220 {offsets = [0, 128], sizes = [8, 64], strides = [1, 1]} : vector<8x192xf32> to vector<8x64xf32>
    %226 = arith.mulf %224, %180 : vector<8x64xf32>
    %227 = arith.mulf %223, %222 : vector<8x64xf32>
    %228 = arith.addf %226, %227 : vector<8x64xf32>
    %229 = math.tanh %228 : vector<8x64xf32>
    %230 = arith.mulf %225, %229 : vector<8x64xf32>
    %231 = arith.truncf %230 : vector<8x64xf32> to vector<8x64xbf16>
    %c0_70 = arith.constant 0 : index
    %c0_71 = arith.constant 0 : index
    %232 = vector.load %arg3[%c0_70, %c0_71] : memref<64x256xbf16, #tpu.memory_space<vmem>>, vector<64x256xbf16>
    %cst_72 = arith.constant dense<0.000000e+00> : vector<8x256xf32>
    %233 = tpu.matmul %231, %232, %cst_72 {dimension_numbers = #tpu.dot_dimension_numbers<[1], [0], [0], [1], [0, 0, 1, 1], [], []>} : vector<8x64xbf16>, vector<64x256xbf16>, vector<8x256xf32> -> vector<8x256xf32>
    %234 = arith.addf %206, %233 : vector<8x256xf32>
    %235 = arith.addf %234, %10 : vector<8x256xf32>
    %236 = vector.extract_strided_slice %235 {offsets = [0, 0], sizes = [8, 192], strides = [1, 1]} : vector<8x256xf32> to vector<8x192xf32>
    %237 = arith.negf %236 : vector<8x192xf32>
    %238 = math.exp %237 : vector<8x192xf32>
    %cst_73 = arith.constant 1.000000e+00 : f32
    %239 = vector.broadcast %cst_73 : f32 to vector<8x192xf32>
    %240 = arith.addf %239, %238 : vector<8x192xf32>
    %241 = arith.divf %239, %240 : vector<8x192xf32>
    %242 = vector.extract_strided_slice %235 {offsets = [0, 192], sizes = [8, 64], strides = [1, 1]} : vector<8x256xf32> to vector<8x64xf32>
    %243 = math.tanh %242 : vector<8x64xf32>
    %244 = vector.extract_strided_slice %241 {offsets = [0, 0], sizes = [8, 64], strides = [1, 1]} : vector<8x192xf32> to vector<8x64xf32>
    %245 = vector.extract_strided_slice %241 {offsets = [0, 64], sizes = [8, 64], strides = [1, 1]} : vector<8x192xf32> to vector<8x64xf32>
    %246 = vector.extract_strided_slice %241 {offsets = [0, 128], sizes = [8, 64], strides = [1, 1]} : vector<8x192xf32> to vector<8x64xf32>
    %247 = arith.mulf %245, %201 : vector<8x64xf32>
    %248 = arith.mulf %244, %243 : vector<8x64xf32>
    %249 = arith.addf %247, %248 : vector<8x64xf32>
    %250 = math.tanh %249 : vector<8x64xf32>
    %251 = arith.mulf %246, %250 : vector<8x64xf32>
    %c5_i32 = arith.constant 5 : i32
    %252 = arith.truncf %251 : vector<8x64xf32> to vector<8x64xbf16>
    %c0_74 = arith.constant 0 : index
    %c0_75 = arith.constant 0 : index
    %253 = vector.load %arg4[%c0_74, %c0_75] : memref<64x256xbf16, #tpu.memory_space<vmem>>, vector<64x256xbf16>
    %cst_76 = arith.constant dense<0.000000e+00> : vector<8x256xf32>
    %254 = tpu.matmul %252, %253, %cst_76 {dimension_numbers = #tpu.dot_dimension_numbers<[1], [0], [0], [1], [0, 0, 1, 1], [], []>} : vector<8x64xbf16>, vector<64x256xbf16>, vector<8x256xf32> -> vector<8x256xf32>
    %c8_i32_77 = arith.constant 8 : i32
    %255 = arith.muli %c5_i32, %c8_i32_77 : i32
    %256 = tpu.assume_multiple %255, 8 : i32
    %257 = arith.index_cast %256 : i32 to index
    %c0_78 = arith.constant 0 : index
    %258 = vector.load %arg10[%257, %c0_78] : memref<64x256xf32, #tpu.memory_space<vmem>>, vector<8x256xf32>
    %259 = arith.truncf %230 : vector<8x64xf32> to vector<8x64xbf16>
    %c0_79 = arith.constant 0 : index
    %c0_80 = arith.constant 0 : index
    %260 = vector.load %arg2[%c0_79, %c0_80] : memref<64x256xbf16, #tpu.memory_space<vmem>>, vector<64x256xbf16>
    %cst_81 = arith.constant dense<0.000000e+00> : vector<8x256xf32>
    %261 = tpu.matmul %259, %260, %cst_81 {dimension_numbers = #tpu.dot_dimension_numbers<[1], [0], [0], [1], [0, 0, 1, 1], [], []>} : vector<8x64xbf16>, vector<64x256xbf16>, vector<8x256xf32> -> vector<8x256xf32>
    %262 = arith.addf %258, %261 : vector<8x256xf32>
    %263 = vector.extract_strided_slice %262 {offsets = [0, 0], sizes = [8, 192], strides = [1, 1]} : vector<8x256xf32> to vector<8x192xf32>
    %264 = arith.negf %263 : vector<8x192xf32>
    %265 = math.exp %264 : vector<8x192xf32>
    %cst_82 = arith.constant 1.000000e+00 : f32
    %266 = vector.broadcast %cst_82 : f32 to vector<8x192xf32>
    %267 = arith.addf %266, %265 : vector<8x192xf32>
    %268 = arith.divf %266, %267 : vector<8x192xf32>
    %269 = vector.extract_strided_slice %262 {offsets = [0, 192], sizes = [8, 64], strides = [1, 1]} : vector<8x256xf32> to vector<8x64xf32>
    %270 = math.tanh %269 : vector<8x64xf32>
    %271 = vector.extract_strided_slice %268 {offsets = [0, 0], sizes = [8, 64], strides = [1, 1]} : vector<8x192xf32> to vector<8x64xf32>
    %272 = vector.extract_strided_slice %268 {offsets = [0, 64], sizes = [8, 64], strides = [1, 1]} : vector<8x192xf32> to vector<8x64xf32>
    %273 = vector.extract_strided_slice %268 {offsets = [0, 128], sizes = [8, 64], strides = [1, 1]} : vector<8x192xf32> to vector<8x64xf32>
    %274 = arith.mulf %272, %228 : vector<8x64xf32>
    %275 = arith.mulf %271, %270 : vector<8x64xf32>
    %276 = arith.addf %274, %275 : vector<8x64xf32>
    %277 = math.tanh %276 : vector<8x64xf32>
    %278 = arith.mulf %273, %277 : vector<8x64xf32>
    %279 = arith.truncf %278 : vector<8x64xf32> to vector<8x64xbf16>
    %c0_83 = arith.constant 0 : index
    %c0_84 = arith.constant 0 : index
    %280 = vector.load %arg3[%c0_83, %c0_84] : memref<64x256xbf16, #tpu.memory_space<vmem>>, vector<64x256xbf16>
    %cst_85 = arith.constant dense<0.000000e+00> : vector<8x256xf32>
    %281 = tpu.matmul %279, %280, %cst_85 {dimension_numbers = #tpu.dot_dimension_numbers<[1], [0], [0], [1], [0, 0, 1, 1], [], []>} : vector<8x64xbf16>, vector<64x256xbf16>, vector<8x256xf32> -> vector<8x256xf32>
    %282 = arith.addf %254, %281 : vector<8x256xf32>
    %283 = arith.addf %282, %10 : vector<8x256xf32>
    %284 = vector.extract_strided_slice %283 {offsets = [0, 0], sizes = [8, 192], strides = [1, 1]} : vector<8x256xf32> to vector<8x192xf32>
    %285 = arith.negf %284 : vector<8x192xf32>
    %286 = math.exp %285 : vector<8x192xf32>
    %cst_86 = arith.constant 1.000000e+00 : f32
    %287 = vector.broadcast %cst_86 : f32 to vector<8x192xf32>
    %288 = arith.addf %287, %286 : vector<8x192xf32>
    %289 = arith.divf %287, %288 : vector<8x192xf32>
    %290 = vector.extract_strided_slice %283 {offsets = [0, 192], sizes = [8, 64], strides = [1, 1]} : vector<8x256xf32> to vector<8x64xf32>
    %291 = math.tanh %290 : vector<8x64xf32>
    %292 = vector.extract_strided_slice %289 {offsets = [0, 0], sizes = [8, 64], strides = [1, 1]} : vector<8x192xf32> to vector<8x64xf32>
    %293 = vector.extract_strided_slice %289 {offsets = [0, 64], sizes = [8, 64], strides = [1, 1]} : vector<8x192xf32> to vector<8x64xf32>
    %294 = vector.extract_strided_slice %289 {offsets = [0, 128], sizes = [8, 64], strides = [1, 1]} : vector<8x192xf32> to vector<8x64xf32>
    %295 = arith.mulf %293, %249 : vector<8x64xf32>
    %296 = arith.mulf %292, %291 : vector<8x64xf32>
    %297 = arith.addf %295, %296 : vector<8x64xf32>
    %298 = math.tanh %297 : vector<8x64xf32>
    %299 = arith.mulf %294, %298 : vector<8x64xf32>
    %c6_i32 = arith.constant 6 : i32
    %300 = arith.truncf %299 : vector<8x64xf32> to vector<8x64xbf16>
    %c0_87 = arith.constant 0 : index
    %c0_88 = arith.constant 0 : index
    %301 = vector.load %arg4[%c0_87, %c0_88] : memref<64x256xbf16, #tpu.memory_space<vmem>>, vector<64x256xbf16>
    %cst_89 = arith.constant dense<0.000000e+00> : vector<8x256xf32>
    %302 = tpu.matmul %300, %301, %cst_89 {dimension_numbers = #tpu.dot_dimension_numbers<[1], [0], [0], [1], [0, 0, 1, 1], [], []>} : vector<8x64xbf16>, vector<64x256xbf16>, vector<8x256xf32> -> vector<8x256xf32>
    %c8_i32_90 = arith.constant 8 : i32
    %303 = arith.muli %c6_i32, %c8_i32_90 : i32
    %304 = tpu.assume_multiple %303, 8 : i32
    %305 = arith.index_cast %304 : i32 to index
    %c0_91 = arith.constant 0 : index
    %306 = vector.load %arg10[%305, %c0_91] : memref<64x256xf32, #tpu.memory_space<vmem>>, vector<8x256xf32>
    %307 = arith.truncf %278 : vector<8x64xf32> to vector<8x64xbf16>
    %c0_92 = arith.constant 0 : index
    %c0_93 = arith.constant 0 : index
    %308 = vector.load %arg2[%c0_92, %c0_93] : memref<64x256xbf16, #tpu.memory_space<vmem>>, vector<64x256xbf16>
    %cst_94 = arith.constant dense<0.000000e+00> : vector<8x256xf32>
    %309 = tpu.matmul %307, %308, %cst_94 {dimension_numbers = #tpu.dot_dimension_numbers<[1], [0], [0], [1], [0, 0, 1, 1], [], []>} : vector<8x64xbf16>, vector<64x256xbf16>, vector<8x256xf32> -> vector<8x256xf32>
    %310 = arith.addf %306, %309 : vector<8x256xf32>
    %311 = vector.extract_strided_slice %310 {offsets = [0, 0], sizes = [8, 192], strides = [1, 1]} : vector<8x256xf32> to vector<8x192xf32>
    %312 = arith.negf %311 : vector<8x192xf32>
    %313 = math.exp %312 : vector<8x192xf32>
    %cst_95 = arith.constant 1.000000e+00 : f32
    %314 = vector.broadcast %cst_95 : f32 to vector<8x192xf32>
    %315 = arith.addf %314, %313 : vector<8x192xf32>
    %316 = arith.divf %314, %315 : vector<8x192xf32>
    %317 = vector.extract_strided_slice %310 {offsets = [0, 192], sizes = [8, 64], strides = [1, 1]} : vector<8x256xf32> to vector<8x64xf32>
    %318 = math.tanh %317 : vector<8x64xf32>
    %319 = vector.extract_strided_slice %316 {offsets = [0, 0], sizes = [8, 64], strides = [1, 1]} : vector<8x192xf32> to vector<8x64xf32>
    %320 = vector.extract_strided_slice %316 {offsets = [0, 64], sizes = [8, 64], strides = [1, 1]} : vector<8x192xf32> to vector<8x64xf32>
    %321 = vector.extract_strided_slice %316 {offsets = [0, 128], sizes = [8, 64], strides = [1, 1]} : vector<8x192xf32> to vector<8x64xf32>
    %322 = arith.mulf %320, %276 : vector<8x64xf32>
    %323 = arith.mulf %319, %318 : vector<8x64xf32>
    %324 = arith.addf %322, %323 : vector<8x64xf32>
    %325 = math.tanh %324 : vector<8x64xf32>
    %326 = arith.mulf %321, %325 : vector<8x64xf32>
    %327 = arith.truncf %326 : vector<8x64xf32> to vector<8x64xbf16>
    %c0_96 = arith.constant 0 : index
    %c0_97 = arith.constant 0 : index
    %328 = vector.load %arg3[%c0_96, %c0_97] : memref<64x256xbf16, #tpu.memory_space<vmem>>, vector<64x256xbf16>
    %cst_98 = arith.constant dense<0.000000e+00> : vector<8x256xf32>
    %329 = tpu.matmul %327, %328, %cst_98 {dimension_numbers = #tpu.dot_dimension_numbers<[1], [0], [0], [1], [0, 0, 1, 1], [], []>} : vector<8x64xbf16>, vector<64x256xbf16>, vector<8x256xf32> -> vector<8x256xf32>
    %330 = arith.addf %302, %329 : vector<8x256xf32>
    %331 = arith.addf %330, %10 : vector<8x256xf32>
    %332 = vector.extract_strided_slice %331 {offsets = [0, 0], sizes = [8, 192], strides = [1, 1]} : vector<8x256xf32> to vector<8x192xf32>
    %333 = arith.negf %332 : vector<8x192xf32>
    %334 = math.exp %333 : vector<8x192xf32>
    %cst_99 = arith.constant 1.000000e+00 : f32
    %335 = vector.broadcast %cst_99 : f32 to vector<8x192xf32>
    %336 = arith.addf %335, %334 : vector<8x192xf32>
    %337 = arith.divf %335, %336 : vector<8x192xf32>
    %338 = vector.extract_strided_slice %331 {offsets = [0, 192], sizes = [8, 64], strides = [1, 1]} : vector<8x256xf32> to vector<8x64xf32>
    %339 = math.tanh %338 : vector<8x64xf32>
    %340 = vector.extract_strided_slice %337 {offsets = [0, 0], sizes = [8, 64], strides = [1, 1]} : vector<8x192xf32> to vector<8x64xf32>
    %341 = vector.extract_strided_slice %337 {offsets = [0, 64], sizes = [8, 64], strides = [1, 1]} : vector<8x192xf32> to vector<8x64xf32>
    %342 = vector.extract_strided_slice %337 {offsets = [0, 128], sizes = [8, 64], strides = [1, 1]} : vector<8x192xf32> to vector<8x64xf32>
    %343 = arith.mulf %341, %297 : vector<8x64xf32>
    %344 = arith.mulf %340, %339 : vector<8x64xf32>
    %345 = arith.addf %343, %344 : vector<8x64xf32>
    %346 = math.tanh %345 : vector<8x64xf32>
    %347 = arith.mulf %342, %346 : vector<8x64xf32>
    %c7_i32 = arith.constant 7 : i32
    %348 = arith.truncf %347 : vector<8x64xf32> to vector<8x64xbf16>
    %c0_100 = arith.constant 0 : index
    %c0_101 = arith.constant 0 : index
    %349 = vector.load %arg4[%c0_100, %c0_101] : memref<64x256xbf16, #tpu.memory_space<vmem>>, vector<64x256xbf16>
    %cst_102 = arith.constant dense<0.000000e+00> : vector<8x256xf32>
    %350 = tpu.matmul %348, %349, %cst_102 {dimension_numbers = #tpu.dot_dimension_numbers<[1], [0], [0], [1], [0, 0, 1, 1], [], []>} : vector<8x64xbf16>, vector<64x256xbf16>, vector<8x256xf32> -> vector<8x256xf32>
    %c8_i32_103 = arith.constant 8 : i32
    %351 = arith.muli %c7_i32, %c8_i32_103 : i32
    %352 = tpu.assume_multiple %351, 8 : i32
    %353 = arith.index_cast %352 : i32 to index
    %c0_104 = arith.constant 0 : index
    %354 = vector.load %arg10[%353, %c0_104] : memref<64x256xf32, #tpu.memory_space<vmem>>, vector<8x256xf32>
    %355 = arith.truncf %326 : vector<8x64xf32> to vector<8x64xbf16>
    %c0_105 = arith.constant 0 : index
    %c0_106 = arith.constant 0 : index
    %356 = vector.load %arg2[%c0_105, %c0_106] : memref<64x256xbf16, #tpu.memory_space<vmem>>, vector<64x256xbf16>
    %cst_107 = arith.constant dense<0.000000e+00> : vector<8x256xf32>
    %357 = tpu.matmul %355, %356, %cst_107 {dimension_numbers = #tpu.dot_dimension_numbers<[1], [0], [0], [1], [0, 0, 1, 1], [], []>} : vector<8x64xbf16>, vector<64x256xbf16>, vector<8x256xf32> -> vector<8x256xf32>
    %358 = arith.addf %354, %357 : vector<8x256xf32>
    %359 = vector.extract_strided_slice %358 {offsets = [0, 0], sizes = [8, 192], strides = [1, 1]} : vector<8x256xf32> to vector<8x192xf32>
    %360 = arith.negf %359 : vector<8x192xf32>
    %361 = math.exp %360 : vector<8x192xf32>
    %cst_108 = arith.constant 1.000000e+00 : f32
    %362 = vector.broadcast %cst_108 : f32 to vector<8x192xf32>
    %363 = arith.addf %362, %361 : vector<8x192xf32>
    %364 = arith.divf %362, %363 : vector<8x192xf32>
    %365 = vector.extract_strided_slice %358 {offsets = [0, 192], sizes = [8, 64], strides = [1, 1]} : vector<8x256xf32> to vector<8x64xf32>
    %366 = math.tanh %365 : vector<8x64xf32>
    %367 = vector.extract_strided_slice %364 {offsets = [0, 0], sizes = [8, 64], strides = [1, 1]} : vector<8x192xf32> to vector<8x64xf32>
    %368 = vector.extract_strided_slice %364 {offsets = [0, 64], sizes = [8, 64], strides = [1, 1]} : vector<8x192xf32> to vector<8x64xf32>
    %369 = vector.extract_strided_slice %364 {offsets = [0, 128], sizes = [8, 64], strides = [1, 1]} : vector<8x192xf32> to vector<8x64xf32>
    %370 = arith.mulf %368, %324 : vector<8x64xf32>
    %371 = arith.mulf %367, %366 : vector<8x64xf32>
    %372 = arith.addf %370, %371 : vector<8x64xf32>
    %373 = math.tanh %372 : vector<8x64xf32>
    %374 = arith.mulf %369, %373 : vector<8x64xf32>
    %375 = arith.truncf %374 : vector<8x64xf32> to vector<8x64xbf16>
    %c0_109 = arith.constant 0 : index
    %c0_110 = arith.constant 0 : index
    %376 = vector.load %arg3[%c0_109, %c0_110] : memref<64x256xbf16, #tpu.memory_space<vmem>>, vector<64x256xbf16>
    %cst_111 = arith.constant dense<0.000000e+00> : vector<8x256xf32>
    %377 = tpu.matmul %375, %376, %cst_111 {dimension_numbers = #tpu.dot_dimension_numbers<[1], [0], [0], [1], [0, 0, 1, 1], [], []>} : vector<8x64xbf16>, vector<64x256xbf16>, vector<8x256xf32> -> vector<8x256xf32>
    %378 = arith.addf %350, %377 : vector<8x256xf32>
    %379 = arith.addf %378, %10 : vector<8x256xf32>
    %380 = vector.extract_strided_slice %379 {offsets = [0, 0], sizes = [8, 192], strides = [1, 1]} : vector<8x256xf32> to vector<8x192xf32>
    %381 = arith.negf %380 : vector<8x192xf32>
    %382 = math.exp %381 : vector<8x192xf32>
    %cst_112 = arith.constant 1.000000e+00 : f32
    %383 = vector.broadcast %cst_112 : f32 to vector<8x192xf32>
    %384 = arith.addf %383, %382 : vector<8x192xf32>
    %385 = arith.divf %383, %384 : vector<8x192xf32>
    %386 = vector.extract_strided_slice %379 {offsets = [0, 192], sizes = [8, 64], strides = [1, 1]} : vector<8x256xf32> to vector<8x64xf32>
    %387 = math.tanh %386 : vector<8x64xf32>
    %388 = vector.extract_strided_slice %385 {offsets = [0, 0], sizes = [8, 64], strides = [1, 1]} : vector<8x192xf32> to vector<8x64xf32>
    %389 = vector.extract_strided_slice %385 {offsets = [0, 64], sizes = [8, 64], strides = [1, 1]} : vector<8x192xf32> to vector<8x64xf32>
    %390 = vector.extract_strided_slice %385 {offsets = [0, 128], sizes = [8, 64], strides = [1, 1]} : vector<8x192xf32> to vector<8x64xf32>
    %391 = arith.mulf %389, %345 : vector<8x64xf32>
    %392 = arith.mulf %388, %387 : vector<8x64xf32>
    %393 = arith.addf %391, %392 : vector<8x64xf32>
    %394 = math.tanh %393 : vector<8x64xf32>
    %395 = arith.mulf %390, %394 : vector<8x64xf32>
    %c8_i32_113 = arith.constant 8 : i32
    %396 = arith.truncf %395 : vector<8x64xf32> to vector<8x64xbf16>
    %c0_114 = arith.constant 0 : index
    %c0_115 = arith.constant 0 : index
    %397 = vector.load %arg7[%c0_114, %c0_115] : memref<64x128xbf16, #tpu.memory_space<vmem>>, vector<64x128xbf16>
    %cst_116 = arith.constant dense<0.000000e+00> : vector<8x128xf32>
    %398 = tpu.matmul %396, %397, %cst_116 {dimension_numbers = #tpu.dot_dimension_numbers<[1], [0], [0], [1], [0, 0, 1, 1], [], []>} : vector<8x64xbf16>, vector<64x128xbf16>, vector<8x128xf32> -> vector<8x128xf32>
    %c0_117 = arith.constant 0 : index
    %c0_118 = arith.constant 0 : index
    %399 = vector.load %arg8[%c0_117, %c0_118] : memref<1x128xf32, #tpu.memory_space<vmem>>, vector<1x128xf32>
    %400 = vector.broadcast %399 : vector<1x128xf32> to vector<8x128xf32>
    %401 = arith.addf %398, %400 : vector<8x128xf32>
    %c0_119 = arith.constant 0 : index
    %c0_120 = arith.constant 0 : index
    %402 = vector.load %arg9[%c0_119, %c0_120] : memref<8x128xf32, #tpu.memory_space<vmem>>, vector<8x128xf32>
    tpu.vector_store %arg9[%c0_119, %c0_120], %401 {strides = array<i32>} : memref<8x128xf32, #tpu.memory_space<vmem>>, vector<8x128xf32>,
    return
  }
}

</mosaic_0001>

<llo_original>
// kernel: lstm_model_forward.1
$region0: #{lstm_model_forward.1}
  #allocation0 [shape = 'u32[]', space=smem, size = 0x4, offset = 0x4, fixed_abs, tag = 'smem constant byte address 0x4 - core index']
  #allocation1 [shape = 'u32[144,128]{1,0:T(1,128)}', space=vmem, size = 0x12000, scoped, tag = 'internal scratch']
  #allocation2 [shape = 'f32[64,256]{1,0:T(8,128)}', space=vmem, size = 0x10000, scoped, tag = 'scratch operand']
  %s0 = inlined_call_operand.vmem [shape: f32[64,8], index: 0, kind: input, shape index: {}]
  %s1 = inlined_call_operand.vmem [shape: bf16[8,256], index: 1, kind: input, shape index: {}]
  %s2 = inlined_call_operand.vmem [shape: bf16[64,256], index: 2, kind: input, shape index: {}]
  %s3 = inlined_call_operand.vmem [shape: bf16[64,256], index: 3, kind: input, shape index: {}]
  %s4 = inlined_call_operand.hbm [shape: bf16[64,256], index: 4, kind: input, shape index: {}]
  %s5 = inlined_call_operand.vmem [shape: f32[1,256], index: 5, kind: input, shape index: {}]
  %s6 = inlined_call_operand.hbm [shape: f32[1,256], index: 6, kind: input, shape index: {}]
  %s7 = inlined_call_operand.vmem [shape: bf16[64,128], index: 7, kind: input, shape index: {}]
  %s8 = inlined_call_operand.vmem [shape: f32[1,128], index: 8, kind: input, shape index: {}]
  %s9 = inlined_call_operand.vmem [shape: f32[8,128], index: 9, kind: output, shape index: {}]
  %s10 = sld [smem:[#allocation0]]
  $region54: #{lstm_model_forward.1} parent=0
    _
  %s12 = ssub.s32 1, %s10
  %s13 = scalar_select 0, %s12, %s10
  $region1: #{lstm_model_forward.1} parent=0
    #allocation3 [shape = 'u8[32768]{0}', space=vmem, size = 0x8000, scoped, tag = 'input window, operand 4, single buffered']
    #allocation4 [shape = 's32[1]{0}', space=sflag, size = 0x4, scoped, tag = 'scoped memory for lstm_model_forward.1']
    #allocation5 [shape = 'u8[1024]{0}', space=vmem, size = 0x400, scoped, tag = 'input window, operand 6, single buffered']
    #allocation6 [shape = 's32[1]{0}', space=sflag, size = 0x4, scoped, tag = 'scoped memory for lstm_model_forward.1']
    %14 = vsyncpa [#allocation4], 0
    %15 = vsyncpa [#allocation6], 0
    // Predicated region
    $region2: #{lstm_model_forward.1} parent=1 // pred_check
      _
    $region3: #{lstm_model_forward.1} parent=1 // pred_check_branch
      %17 = sbr.rel (0) target = $region5
    $region4: #{lstm_model_forward.1} parent=1 // pred_region
      _
    $region5: #{lstm_model_forward.1} parent=1 // pred_fallthru
      _
    // Predicated region
    $region6: #{lstm_model_forward.1} parent=1 // pred_check
      _
    $region7: #{lstm_model_forward.1} parent=1 // pred_check_branch
      %19 = sbr.rel (0) target = $region9
    $region8: #{lstm_model_forward.1} parent=1 // pred_region
      _
    $region9: #{lstm_model_forward.1} parent=1 // pred_fallthru
      _
    // Predicated region
    $region10: #{lstm_model_forward.1} parent=1 // pred_check
      _
    $region11: #{lstm_model_forward.1} parent=1 // pred_check_branch
      %21 = sbr.rel (0) target = $region13
    $region12: #{lstm_model_forward.1} parent=1 // pred_region
      _
    $region13: #{lstm_model_forward.1} parent=1 // pred_fallthru
      _
    // Predicated region
    $region14: #{lstm_model_forward.1} parent=1 // pred_check
      _
    $region15: #{lstm_model_forward.1} parent=1 // pred_check_branch
      %23 = sbr.rel (0) target = $region17
    $region16: #{lstm_model_forward.1} parent=1 // pred_region
      _
    $region17: #{lstm_model_forward.1} parent=1 // pred_fallthru
      _
    // Predicated region
    $region18: #{lstm_model_forward.1} parent=1 // pred_check
      _
    $region19: #{lstm_model_forward.1} parent=1 // pred_check_branch
      %25 = sbr.rel (0) target = $region21
    $region20: #{lstm_model_forward.1} parent=1 // pred_region
      %s27 = ssub.s32 1024, 1024
      %28 = vsyncadd [#allocation4], %s27
      %s29 = sshll.u32 [#allocation3], 4
      %s30 = int_to_ptr.vmem [resolvable:$true] %s29
      %35 = dma.hbm_to_vmem [thread:$0]  %s4, 1024, %s30, [#allocation4], 128, 128, 8
    $region21: #{lstm_model_forward.1} parent=1 // pred_fallthru
      _
    // Predicated region
    $region22: #{lstm_model_forward.1} parent=1 // pred_check
      _
    $region23: #{lstm_model_forward.1} parent=1 // pred_check_branch
      %37 = sbr.rel (0) target = $region25
    $region24: #{lstm_model_forward.1} parent=1 // pred_region
      _
    $region25: #{lstm_model_forward.1} parent=1 // pred_fallthru
      _
    // Predicated region
    $region26: #{lstm_model_forward.1} parent=1 // pred_check
      _
    $region27: #{lstm_model_forward.1} parent=1 // pred_check_branch
      %39 = sbr.rel (0) target = $region29
    $region28: #{lstm_model_forward.1} parent=1 // pred_region
      %s41 = ssub.s32 32, 32
      %42 = vsyncadd [#allocation6], %s41
      %s44 = sshll.u32 [#allocation5], 4
      %s45 = int_to_ptr.vmem [resolvable:$true] %s44
      %47 = dma.hbm_to_vmem [thread:$0]  %s6, 32, %s45, [#allocation6]
    $region29: #{lstm_model_forward.1} parent=1 // pred_fallthru
      _
    // Predicated region
    $region30: #{lstm_model_forward.1} parent=1 // pred_check
      _
    $region31: #{lstm_model_forward.1} parent=1 // pred_check_branch
      %49 = sbr.rel (0) target = $region33
    $region32: #{lstm_model_forward.1} parent=1 // pred_region
      _
    $region33: #{lstm_model_forward.1} parent=1 // pred_fallthru
      _
    // Predicated region
    $region34: #{lstm_model_forward.1} parent=1 // pred_check
      _
    $region35: #{lstm_model_forward.1} parent=1 // pred_check_branch
      %51 = sbr.rel (0) target = $region37
    $region36: #{lstm_model_forward.1} parent=1 // pred_region
      _
    $region37: #{lstm_model_forward.1} parent=1 // pred_fallthru
      _
    // Predicated region
    $region38: #{lstm_model_forward.1} parent=1 // pred_check
      _
    $region39: #{lstm_model_forward.1} parent=1 // pred_check_branch
      %53 = sbr.rel (0) target = $region41
    $region40: #{lstm_model_forward.1} parent=1 // pred_region
      %54 = dma.done [#allocation4], 1024
    $region41: #{lstm_model_forward.1} parent=1 // pred_fallthru
      _
    // Predicated region
    $region42: #{lstm_model_forward.1} parent=1 // pred_check
      _
    $region43: #{lstm_model_forward.1} parent=1 // pred_check_branch
      %56 = sbr.rel (0) target = $region45
    $region44: #{lstm_model_forward.1} parent=1 // pred_region
      %57 = dma.done [#allocation6], 32
    $region45: #{lstm_model_forward.1} parent=1 // pred_fallthru
      _
    %v59 = vld [vmem:[%s0] sm:$0xff]
    %v60 = vld [vmem:[%s0 + $0x8] sm:$0xff]
    %v61 = vld [vmem:[%s0 + $0x10] sm:$0xff]
    %v62 = vld [vmem:[%s0 + $0x18] sm:$0xff]
    %v63 = vld [vmem:[%s0 + $0x20] sm:$0xff]
    %v64 = vld [vmem:[%s0 + $0x28] sm:$0xff]
    %v65 = vld [vmem:[%s0 + $0x30] sm:$0xff]
    %v66 = vld [vmem:[%s0 + $0x38] sm:$0xff]
    %v67 = vpack.c.bf16 %v60, %v59
    %v68 = vpack.c.bf16 %v62, %v61
    %v69 = vpack.c.bf16 %v64, %v63
    %v70 = vpack.c.bf16 %v66, %v65
    %v71 = vld [vmem:[%s1] sm:$0xff]
    %v72 = vld [vmem:[%s5] sm:$0x3]
    %v74 = vlaneseq
    %v75 = vshrl.u32 %v74, 7
    %v76 = vsub.s32 0, %v75
    %v77 = vrot.slane %v72, %v76
    %v78 = vlaneseq
    %v79 = vshrl.u32 %v78, 7
    %v80 = vsub.s32 1, %v79
    %v81 = vrot.slane %v72, %v80
    %v85 = vunpack.c.l.b16 %v71
    %v86 = vunpack.c.h.b16 %v71
    %v87 = vpack.c.b16 %v85, %v85
    %v88 = vpack.c.b16 %v86, %v86
    %vm89 = vcmask 64512
    %v91 = vsel %vm89, %v67, 0
    %v94 = vsel %vm89, %v68, 0
    %v97 = vsel %vm89, %v69, 0
    %v100 = vsel %vm89, %v70, 0
    %vm102 = vcmask 1043456
    %v104 = vsel %vm102, %v87, 0
    %v107 = vsel %vm102, %v88, 0
    %109 = vmatprep.subr.bf16.mxu0 %v107
    %110 = vmatpush1.bf16.msra.mxu0 %v104
    %111 = vmatprep.subr.bf16.mxu0 0
    %112 = vmatpush1.bf16.msra.mxu0 0
    %113 = vmatprep.subr.bf16.mxu0 0
    %114 = vmatpush1.bf16.msra.mxu0 0
    %115 = vmatprep.subr.bf16.mxu0 0
    %116 = vmatpush1.bf16.msra.mxu0 0
    %117 = vmatprep.subr.bf16.mxu0 0
    %118 = vmatpush1.bf16.msra.mxu0 0
    %119 = vmatprep.subr.bf16.mxu0 0
    %120 = vmatpush1.bf16.msra.mxu0 0
    %121 = vmatprep.subr.bf16.mxu0 0
    %122 = vmatpush1.bf16.msra.mxu0 0
    %123 = vmatprep.subr.bf16.mxu0 0
    %124 = vmatpush1.bf16.msra.mxu0 0
    %125 = vmatprep.subr.bf16.mxu0 0
    %126 = vmatpush1.bf16.msra.mxu0 0
    %127 = vmatprep.subr.bf16.mxu0 0
    %128 = vmatpush1.bf16.msra.mxu0 0
    %129 = vmatprep.subr.bf16.mxu0 0
    %130 = vmatpush1.bf16.msra.mxu0 0
    %131 = vmatprep.subr.bf16.mxu0 0
    %132 = vmatpush1.bf16.msra.mxu0 0
    %133 = vmatprep.subr.bf16.mxu0 0
    %134 = vmatpush1.bf16.msra.mxu0 0
    %135 = vmatprep.subr.bf16.mxu0 0
    %136 = vmatpush1.bf16.msra.mxu0 0
    %137 = vmatprep.subr.bf16.mxu0 0
    %138 = vmatpush1.bf16.msra.mxu0 0
    %139 = vmatprep.subr.bf16.mxu0 0
    %140 = vmatpush1.bf16.msra.mxu0 0
    %141 = vmatprep.mubr.bf16.mxu0 0
    %142 = vmatmul.mubr.bf16.gmra.mrb[0].mxu0 %v91
    %v143 = vpop.f32.mrb[0].mxu0
    %v144 = vadd.f32 %v77, %v143
    %v145 = vpop.f32.mrb[0].mxu0
    %v146 = vadd.f32 %v81, %v145
    %v147 = vpop.f32.mrb[0].mxu0
    %v148 = vadd.f32 %v77, %v147
    %v149 = vpop.f32.mrb[0].mxu0
    %v150 = vadd.f32 %v81, %v149
    %151 = vmatprep.mubr.bf16.mxu0 0
    %152 = vmatmul.mubr.bf16.gmra.mrb[0].mxu0 %v94
    %v153 = vpop.f32.mrb[0].mxu0
    %v154 = vadd.f32 %v77, %v153
    %v155 = vpop.f32.mrb[0].mxu0
    %v156 = vadd.f32 %v81, %v155
    %v157 = vpop.f32.mrb[0].mxu0
    %v158 = vadd.f32 %v77, %v157
    %v159 = vpop.f32.mrb[0].mxu0
    %v160 = vadd.f32 %v81, %v159
    %161 = vmatprep.mubr.bf16.mxu0 0
    %162 = vmatmul.mubr.bf16.gmra.mrb[0].mxu0 %v97
    %v163 = vpop.f32.mrb[0].mxu0
    %v164 = vadd.f32 %v77, %v163
    %v165 = vpop.f32.mrb[0].mxu0
    %v166 = vadd.f32 %v81, %v165
    %v167 = vpop.f32.mrb[0].mxu0
    %v168 = vadd.f32 %v77, %v167
    %v169 = vpop.f32.mrb[0].mxu0
    %v170 = vadd.f32 %v81, %v169
    %171 = vmatprep.mubr.bf16.mxu0 0
    %172 = vmatmul.mubr.bf16.gmra.mrb[0].mxu0 %v100
    %v173 = vpop.f32.mrb[0].mxu0
    %v174 = vadd.f32 %v77, %v173
    %v175 = vpop.f32.mrb[0].mxu0
    %v176 = vadd.f32 %v81, %v175
    %v177 = vpop.f32.mrb[0].mxu0
    %v178 = vadd.f32 %v77, %v177
    %v179 = vpop.f32.mrb[0].mxu0
    %v180 = vadd.f32 %v81, %v179
    %181 = vdwg.mxu0
    %182 = vst [vmem:[#allocation2] sm:$0xff] %v144
    %183 = vst [vmem:[#allocation2 + $0x8] sm:$0xff] %v146
    %184 = vst [vmem:[#allocation2 + $0x10] sm:$0xff] %v148
    %185 = vst [vmem:[#allocation2 + $0x18] sm:$0xff] %v150
    %186 = vst [vmem:[#allocation2 + $0x20] sm:$0xff] %v154
    %187 = vst [vmem:[#allocation2 + $0x28] sm:$0xff] %v156
    %188 = vst [vmem:[#allocation2 + $0x30] sm:$0xff] %v158
    %189 = vst [vmem:[#allocation2 + $0x38] sm:$0xff] %v160
    %190 = vst [vmem:[#allocation2 + $0x40] sm:$0xff] %v164
    %191 = vst [vmem:[#allocation2 + $0x48] sm:$0xff] %v166
    %192 = vst [vmem:[#allocation2 + $0x50] sm:$0xff] %v168
    %193 = vst [vmem:[#allocation2 + $0x58] sm:$0xff] %v170
    %194 = vst [vmem:[#allocation2 + $0x60] sm:$0xff] %v174
    %195 = vst [vmem:[#allocation2 + $0x68] sm:$0xff] %v176
    %196 = vst [vmem:[#allocation2 + $0x70] sm:$0xff] %v178
    %197 = vst [vmem:[#allocation2 + $0x78] sm:$0xff] %v180
    %v198 = vld [vmem:[#allocation5] sm:$0x3]
    %v200 = vlaneseq
    %v201 = vshrl.u32 %v200, 7
    %v202 = vsub.s32 0, %v201
    %v203 = vrot.slane %v198, %v202
    %v204 = vlaneseq
    %v205 = vshrl.u32 %v204, 7
    %v206 = vsub.s32 1, %v205
    %v207 = vrot.slane %v198, %v206
    %v210 = vld [vmem:[#allocation3] sm:$0xff]
    %v211 = vld [vmem:[#allocation3 + $0x8] sm:$0xff]
    %v212 = vld [vmem:[#allocation3 + $0x10] sm:$0xff]
    %v213 = vld [vmem:[#allocation3 + $0x18] sm:$0xff]
    %v214 = vld [vmem:[#allocation3 + $0x20] sm:$0xff]
    %v215 = vld [vmem:[#allocation3 + $0x28] sm:$0xff]
    %v216 = vld [vmem:[#allocation3 + $0x30] sm:$0xff]
    %v217 = vld [vmem:[#allocation3 + $0x38] sm:$0xff]
    %s218 = smul.u32 0, 2
    %s219 = smul.addr %s218, 8
    %s220 = scalar_lea.vmem [#allocation2], %s219
    %v221 = vld [vmem:[%s220] sm:$0xff]
    %v222 = vld [vmem:[%s220 + $0x8] sm:$0xff]
    %v223 = vld [vmem:[%s2] sm:$0xff]
    %v224 = vld [vmem:[%s2 + $0x8] sm:$0xff]
    %v225 = vld [vmem:[%s2 + $0x10] sm:$0xff]
    %v226 = vld [vmem:[%s2 + $0x18] sm:$0xff]
    %v227 = vld [vmem:[%s2 + $0x20] sm:$0xff]
    %v228 = vld [vmem:[%s2 + $0x28] sm:$0xff]
    %v229 = vld [vmem:[%s2 + $0x30] sm:$0xff]
    %v230 = vld [vmem:[%s2 + $0x38] sm:$0xff]
    %v239 = vunpack.c.l.b16 %v223
    %v240 = vunpack.c.h.b16 %v223
    %v241 = vunpack.c.l.b16 %v224
    %v242 = vunpack.c.h.b16 %v224
    %v243 = vunpack.c.l.b16 %v225
    %v244 = vunpack.c.h.b16 %v225
    %v245 = vunpack.c.l.b16 %v226
    %v246 = vunpack.c.h.b16 %v226
    %v247 = vunpack.c.l.b16 %v227
    %v248 = vunpack.c.h.b16 %v227
    %v249 = vunpack.c.l.b16 %v228
    %v250 = vunpack.c.h.b16 %v228
    %v251 = vunpack.c.l.b16 %v229
    %v252 = vunpack.c.h.b16 %v229
    %v253 = vunpack.c.l.b16 %v230
    %v254 = vunpack.c.h.b16 %v230
    %v255 = vpack.c.b16 %v241, %v239
    %v256 = vpack.c.b16 %v242, %v240
    %v257 = vpack.c.b16 %v245, %v243
    %v258 = vpack.c.b16 %v246, %v244
    %v259 = vpack.c.b16 %v249, %v247
    %v260 = vpack.c.b16 %v250, %v248
    %v261 = vpack.c.b16 %v253, %v251
    %v262 = vpack.c.b16 %v254, %v252
    %vm271 = vcmask 523264
    %v273 = vsel %vm271, 0, 0
    %275 = vmatprep.subr.bf16.mxu0 %v256
    %276 = vmatpush1.bf16.msra.mxu0 %v255
    %277 = vmatprep.subr.bf16.mxu0 %v258
    %278 = vmatpush1.bf16.msra.mxu0 %v257
    %279 = vmatprep.subr.bf16.mxu0 %v260
    %280 = vmatpush1.bf16.msra.mxu0 %v259
    %281 = vmatprep.subr.bf16.mxu0 %v262
    %282 = vmatpush1.bf16.msra.mxu0 %v261
    %283 = vmatprep.subr.bf16.mxu0 0
    %284 = vmatpush1.bf16.msra.mxu0 0
    %285 = vmatprep.subr.bf16.mxu0 0
    %286 = vmatpush1.bf16.msra.mxu0 0
    %287 = vmatprep.subr.bf16.mxu0 0
    %288 = vmatpush1.bf16.msra.mxu0 0
    %289 = vmatprep.subr.bf16.mxu0 0
    %290 = vmatpush1.bf16.msra.mxu0 0
    %291 = vmatprep.subr.bf16.mxu0 0
    %292 = vmatpush1.bf16.msra.mxu0 0
    %293 = vmatprep.subr.bf16.mxu0 0
    %294 = vmatpush1.bf16.msra.mxu0 0
    %295 = vmatprep.subr.bf16.mxu0 0
    %296 = vmatpush1.bf16.msra.mxu0 0
    %297 = vmatprep.subr.bf16.mxu0 0
    %298 = vmatpush1.bf16.msra.mxu0 0
    %299 = vmatprep.subr.bf16.mxu0 0
    %300 = vmatpush1.bf16.msra.mxu0 0
    %301 = vmatprep.subr.bf16.mxu0 0
    %302 = vmatpush1.bf16.msra.mxu0 0
    %303 = vmatprep.subr.bf16.mxu0 0
    %304 = vmatpush1.bf16.msra.mxu0 0
    %305 = vmatprep.subr.bf16.mxu0 0
    %306 = vmatpush1.bf16.msra.mxu0 0
    %307 = vmatprep.mubr.bf16.mxu0 0
    %308 = vmatmul.mubr.bf16.gmra.mrb[0].mxu0 %v273
    %v309 = vpop.f32.mrb[0].mxu0
    %v310 = vadd.f32 0.0, %v309
    %v311 = vpop.f32.mrb[0].mxu0
    %v312 = vadd.f32 0.0, %v311
    %v313 = vpop.f32.mrb[0].mxu0
    %v314 = vpop.f32.mrb[0].mxu0
    %315 = vdwg.mxu0
    %v316 = vadd.f32 %v221, %v310
    %v317 = vadd.f32 %v222, %v312
    %v318 = vxor.u32 %v316, 2147483648
    %v319 = vxor.u32 %v317, 2147483648
    %v320 = vmul.f32 %v318, 1.442695
    %v321 = vpow.pop %v320
    %v322 = vmul.f32 %v319, 1.442695
    %v323 = vpow.pop %v322
    %v324 = vadd.f32 %v321, 1.0
    %v325 = vadd.f32 %v323, 1.0
    %v326 = vrcp.pop %v324
    %v327 = vmul.f32 1.0, %v326
    %v328 = vrcp.pop %v325
    %v329 = vmul.f32 1.0, %v328
    %v330 = vtanh.pop %v317
    %v331 = vmul.f32 %v327, 0.0
    %333 = vrot.lane.b32.xlu0 %v330, 64
    %v334 = vpop.permute.xlu0 %333
    %v336 = vmul.f32 %v327, %v334
    %338 = vrot.lane.b32.xlu0 %v336, 64
    %v339 = vpop.permute.xlu0 %338
    %v341 = vadd.f32 %v331, %v339
    %v342 = vtanh.pop %v341
    %344 = vrot.lane.b32.xlu0 %v342, 64
    %v345 = vpop.permute.xlu0 %344
    %v347 = vmul.f32 %v329, %v345
    %v348 = vpack.c.bf16 %v347, %v347
    %v349 = vld [vmem:[%s3] sm:$0xff]
    %v350 = vld [vmem:[%s3 + $0x8] sm:$0xff]
    %v351 = vld [vmem:[%s3 + $0x10] sm:$0xff]
    %v352 = vld [vmem:[%s3 + $0x18] sm:$0xff]
    %v353 = vld [vmem:[%s3 + $0x20] sm:$0xff]
    %v354 = vld [vmem:[%s3 + $0x28] sm:$0xff]
    %v355 = vld [vmem:[%s3 + $0x30] sm:$0xff]
    %v356 = vld [vmem:[%s3 + $0x38] sm:$0xff]
    %v365 = vunpack.c.l.b16 %v349
    %v366 = vunpack.c.h.b16 %v349
    %v367 = vunpack.c.l.b16 %v350
    %v368 = vunpack.c.h.b16 %v350
    %v369 = vunpack.c.l.b16 %v351
    %v370 = vunpack.c.h.b16 %v351
    %v371 = vunpack.c.l.b16 %v352
    %v372 = vunpack.c.h.b16 %v352
    %v373 = vunpack.c.l.b16 %v353
    %v374 = vunpack.c.h.b16 %v353
    %v375 = vunpack.c.l.b16 %v354
    %v376 = vunpack.c.h.b16 %v354
    %v377 = vunpack.c.l.b16 %v355
    %v378 = vunpack.c.h.b16 %v355
    %v379 = vunpack.c.l.b16 %v356
    %v380 = vunpack.c.h.b16 %v356
    %v381 = vpack.c.b16 %v367, %v365
    %v382 = vpack.c.b16 %v368, %v366
    %v383 = vpack.c.b16 %v371, %v369
    %v384 = vpack.c.b16 %v372, %v370
    %v385 = vpack.c.b16 %v375, %v373
    %v386 = vpack.c.b16 %v376, %v374
    %v387 = vpack.c.b16 %v379, %v377
    %v388 = vpack.c.b16 %v380, %v378
    %v398 = vsel %vm271, %v348, 0
    %400 = vmatprep.subr.bf16.mxu0 %v382
    %401 = vmatpush1.bf16.msra.mxu0 %v381
    %402 = vmatprep.subr.bf16.mxu0 %v384
    %403 = vmatpush1.bf16.msra.mxu0 %v383
    %404 = vmatprep.subr.bf16.mxu0 %v386
    %405 = vmatpush1.bf16.msra.mxu0 %v385
    %406 = vmatprep.subr.bf16.mxu0 %v388
    %407 = vmatpush1.bf16.msra.mxu0 %v387
    %408 = vmatprep.subr.bf16.mxu0 0
    %409 = vmatpush1.bf16.msra.mxu0 0
    %410 = vmatprep.subr.bf16.mxu0 0
    %411 = vmatpush1.bf16.msra.mxu0 0
    %412 = vmatprep.subr.bf16.mxu0 0
    %413 = vmatpush1.bf16.msra.mxu0 0
    %414 = vmatprep.subr.bf16.mxu0 0
    %415 = vmatpush1.bf16.msra.mxu0 0
    %416 = vmatprep.subr.bf16.mxu0 0
    %417 = vmatpush1.bf16.msra.mxu0 0
    %418 = vmatprep.subr.bf16.mxu0 0
    %419 = vmatpush1.bf16.msra.mxu0 0
    %420 = vmatprep.subr.bf16.mxu0 0
    %421 = vmatpush1.bf16.msra.mxu0 0
    %422 = vmatprep.subr.bf16.mxu0 0
    %423 = vmatpush1.bf16.msra.mxu0 0
    %424 = vmatprep.subr.bf16.mxu0 0
    %425 = vmatpush1.bf16.msra.mxu0 0
    %426 = vmatprep.subr.bf16.mxu0 0
    %427 = vmatpush1.bf16.msra.mxu0 0
    %428 = vmatprep.subr.bf16.mxu0 0
    %429 = vmatpush1.bf16.msra.mxu0 0
    %430 = vmatprep.subr.bf16.mxu0 0
    %431 = vmatpush1.bf16.msra.mxu0 0
    %432 = vmatprep.mubr.bf16.mxu0 0
    %433 = vmatmul.mubr.bf16.gmra.mrb[0].mxu0 %v398
    %v434 = vpop.f32.mrb[0].mxu0
    %v435 = vadd.f32 0.0, %v434
    %v436 = vpop.f32.mrb[0].mxu0
    %v437 = vadd.f32 0.0, %v436
    %v438 = vpop.f32.mrb[0].mxu0
    %v439 = vpop.f32.mrb[0].mxu0
    %440 = vdwg.mxu0
    %v449 = vunpack.c.l.b16 %v210
    %v450 = vunpack.c.h.b16 %v210
    %v451 = vunpack.c.l.b16 %v211
    %v452 = vunpack.c.h.b16 %v211
    %v453 = vunpack.c.l.b16 %v212
    %v454 = vunpack.c.h.b16 %v212
    %v455 = vunpack.c.l.b16 %v213
    %v456 = vunpack.c.h.b16 %v213
    %v457 = vunpack.c.l.b16 %v214
    %v458 = vunpack.c.h.b16 %v214
    %v459 = vunpack.c.l.b16 %v215
    %v460 = vunpack.c.h.b16 %v215
    %v461 = vunpack.c.l.b16 %v216
    %v462 = vunpack.c.h.b16 %v216
    %v463 = vunpack.c.l.b16 %v217
    %v464 = vunpack.c.h.b16 %v217
    %v465 = vpack.c.b16 %v451, %v449
    %v466 = vpack.c.b16 %v452, %v450
    %v467 = vpack.c.b16 %v455, %v453
    %v468 = vpack.c.b16 %v456, %v454
    %v469 = vpack.c.b16 %v459, %v457
    %v470 = vpack.c.b16 %v460, %v458
    %v471 = vpack.c.b16 %v463, %v461
    %v472 = vpack.c.b16 %v464, %v462
    %481 = vmatprep.subr.bf16.mxu0 %v466
    %482 = vmatpush1.bf16.msra.mxu0 %v465
    %483 = vmatprep.subr.bf16.mxu0 %v468
    %484 = vmatpush1.bf16.msra.mxu0 %v467
    %485 = vmatprep.subr.bf16.mxu0 %v470
    %486 = vmatpush1.bf16.msra.mxu0 %v469
    %487 = vmatprep.subr.bf16.mxu0 %v472
    %488 = vmatpush1.bf16.msra.mxu0 %v471
    %489 = vmatprep.subr.bf16.mxu0 0
    %490 = vmatpush1.bf16.msra.mxu0 0
    %491 = vmatprep.subr.bf16.mxu0 0
    %492 = vmatpush1.bf16.msra.mxu0 0
    %493 = vmatprep.subr.bf16.mxu0 0
    %494 = vmatpush1.bf16.msra.mxu0 0
    %495 = vmatprep.subr.bf16.mxu0 0
    %496 = vmatpush1.bf16.msra.mxu0 0
    %497 = vmatprep.subr.bf16.mxu0 0
    %498 = vmatpush1.bf16.msra.mxu0 0
    %499 = vmatprep.subr.bf16.mxu0 0
    %500 = vmatpush1.bf16.msra.mxu0 0
    %501 = vmatprep.subr.bf16.mxu0 0
    %502 = vmatpush1.bf16.msra.mxu0 0
    %503 = vmatprep.subr.bf16.mxu0 0
    %504 = vmatpush1.bf16.msra.mxu0 0
    %505 = vmatprep.subr.bf16.mxu0 0
    %506 = vmatpush1.bf16.msra.mxu0 0
    %507 = vmatprep.subr.bf16.mxu0 0
    %508 = vmatpush1.bf16.msra.mxu0 0
    %509 = vmatprep.subr.bf16.mxu0 0
    %510 = vmatpush1.bf16.msra.mxu0 0
    %511 = vmatprep.subr.bf16.mxu0 0
    %512 = vmatpush1.bf16.msra.mxu0 0
    %513 = vmatprep.mubr.bf16.mxu0 0
    %514 = vmatmul.mubr.bf16.gmra.mrb[0].mxu0 %v273
    %v515 = vpop.f32.mrb[0].mxu0
    %v516 = vadd.f32 %v435, %v515
    %v517 = vpop.f32.mrb[0].mxu0
    %v518 = vadd.f32 %v437, %v517
    %v519 = vpop.f32.mrb[0].mxu0
    %v520 = vpop.f32.mrb[0].mxu0
    %521 = vdwg.mxu0
    %v522 = vadd.f32 %v516, %v203
    %v523 = vadd.f32 %v518, %v207
    %v524 = vxor.u32 %v522, 2147483648
    %v525 = vxor.u32 %v523, 2147483648
    %v526 = vmul.f32 %v524, 1.442695
    %v527 = vpow.pop %v526
    %v528 = vmul.f32 %v525, 1.442695
    %v529 = vpow.pop %v528
    %v530 = vadd.f32 %v527, 1.0
    %v531 = vadd.f32 %v529, 1.0
    %v532 = vrcp.pop %v530
    %v533 = vmul.f32 1.0, %v532
    %v534 = vrcp.pop %v531
    %v535 = vmul.f32 1.0, %v534
    %v536 = vtanh.pop %v523
    %v537 = vmul.f32 %v533, 0.0
    %539 = vrot.lane.b32.xlu0 %v536, 64
    %v540 = vpop.permute.xlu0 %539
    %v542 = vmul.f32 %v533, %v540
    %544 = vrot.lane.b32.xlu0 %v542, 64
    %v545 = vpop.permute.xlu0 %544
    %v547 = vadd.f32 %v537, %v545
    %v548 = vtanh.pop %v547
    %550 = vrot.lane.b32.xlu0 %v548, 64
    %v551 = vpop.permute.xlu0 %550
    %v553 = vmul.f32 %v535, %v551
    %v554 = vpack.c.bf16 %v553, %v553
    %s555 = smul.u32 1, 2
    %s556 = smul.addr %s555, 8
    %s557 = scalar_lea.vmem [#allocation2], %s556
    %v558 = vld [vmem:[%s557] sm:$0xff]
    %v559 = vld [vmem:[%s557 + $0x8] sm:$0xff]
    %560 = vmatprep.subr.bf16.mxu0 %v256
    %561 = vmatpush1.bf16.msra.mxu0 %v255
    %562 = vmatprep.subr.bf16.mxu0 %v258
    %563 = vmatpush1.bf16.msra.mxu0 %v257
    %564 = vmatprep.subr.bf16.mxu0 %v260
    %565 = vmatpush1.bf16.msra.mxu0 %v259
    %566 = vmatprep.subr.bf16.mxu0 %v262
    %567 = vmatpush1.bf16.msra.mxu0 %v261
    %568 = vmatprep.subr.bf16.mxu0 0
    %569 = vmatpush1.bf16.msra.mxu0 0
    %570 = vmatprep.subr.bf16.mxu0 0
    %571 = vmatpush1.bf16.msra.mxu0 0
    %572 = vmatprep.subr.bf16.mxu0 0
    %573 = vmatpush1.bf16.msra.mxu0 0
    %574 = vmatprep.subr.bf16.mxu0 0
    %575 = vmatpush1.bf16.msra.mxu0 0
    %576 = vmatprep.subr.bf16.mxu0 0
    %577 = vmatpush1.bf16.msra.mxu0 0
    %578 = vmatprep.subr.bf16.mxu0 0
    %579 = vmatpush1.bf16.msra.mxu0 0
    %580 = vmatprep.subr.bf16.mxu0 0
    %581 = vmatpush1.bf16.msra.mxu0 0
    %582 = vmatprep.subr.bf16.mxu0 0
    %583 = vmatpush1.bf16.msra.mxu0 0
    %584 = vmatprep.subr.bf16.mxu0 0
    %585 = vmatpush1.bf16.msra.mxu0 0
    %586 = vmatprep.subr.bf16.mxu0 0
    %587 = vmatpush1.bf16.msra.mxu0 0
    %588 = vmatprep.subr.bf16.mxu0 0
    %589 = vmatpush1.bf16.msra.mxu0 0
    %590 = vmatprep.subr.bf16.mxu0 0
    %591 = vmatpush1.bf16.msra.mxu0 0
    %592 = vmatprep.mubr.bf16.mxu0 0
    %593 = vmatmul.mubr.bf16.gmra.mrb[0].mxu0 %v398
    %v594 = vpop.f32.mrb[0].mxu0
    %v595 = vadd.f32 0.0, %v594
    %v596 = vpop.f32.mrb[0].mxu0
    %v597 = vadd.f32 0.0, %v596
    %v598 = vpop.f32.mrb[0].mxu0
    %v599 = vpop.f32.mrb[0].mxu0
    %600 = vdwg.mxu0
    %v601 = vadd.f32 %v558, %v595
    %v602 = vadd.f32 %v559, %v597
    %v603 = vxor.u32 %v601, 2147483648
    %v604 = vxor.u32 %v602, 2147483648
    %v605 = vmul.f32 %v603, 1.442695
    %v606 = vpow.pop %v605
    %v607 = vmul.f32 %v604, 1.442695
    %v608 = vpow.pop %v607
    %v609 = vadd.f32 %v606, 1.0
    %v610 = vadd.f32 %v608, 1.0
    %v611 = vrcp.pop %v609
    %v612 = vmul.f32 1.0, %v611
    %v613 = vrcp.pop %v610
    %v614 = vmul.f32 1.0, %v613
    %v615 = vtanh.pop %v602
    %v616 = vmul.f32 %v612, %v341
    %618 = vrot.lane.b32.xlu0 %v615, 64
    %v619 = vpop.permute.xlu0 %618
    %v621 = vmul.f32 %v612, %v619
    %623 = vrot.lane.b32.xlu0 %v621, 64
    %v624 = vpop.permute.xlu0 %623
    %v626 = vadd.f32 %v616, %v624
    %v627 = vtanh.pop %v626
    %629 = vrot.lane.b32.xlu0 %v627, 64
    %v630 = vpop.permute.xlu0 %629
    %v632 = vmul.f32 %v614, %v630
    %v633 = vpack.c.bf16 %v632, %v632
    %v635 = vsel %vm271, %v633, 0
    %637 = vmatprep.subr.bf16.mxu0 %v382
    %638 = vmatpush1.bf16.msra.mxu0 %v381
    %639 = vmatprep.subr.bf16.mxu0 %v384
    %640 = vmatpush1.bf16.msra.mxu0 %v383
    %641 = vmatprep.subr.bf16.mxu0 %v386
    %642 = vmatpush1.bf16.msra.mxu0 %v385
    %643 = vmatprep.subr.bf16.mxu0 %v388
    %644 = vmatpush1.bf16.msra.mxu0 %v387
    %645 = vmatprep.subr.bf16.mxu0 0
    %646 = vmatpush1.bf16.msra.mxu0 0
    %647 = vmatprep.subr.bf16.mxu0 0
    %648 = vmatpush1.bf16.msra.mxu0 0
    %649 = vmatprep.subr.bf16.mxu0 0
    %650 = vmatpush1.bf16.msra.mxu0 0
    %651 = vmatprep.subr.bf16.mxu0 0
    %652 = vmatpush1.bf16.msra.mxu0 0
    %653 = vmatprep.subr.bf16.mxu0 0
    %654 = vmatpush1.bf16.msra.mxu0 0
    %655 = vmatprep.subr.bf16.mxu0 0
    %656 = vmatpush1.bf16.msra.mxu0 0
    %657 = vmatprep.subr.bf16.mxu0 0
    %658 = vmatpush1.bf16.msra.mxu0 0
    %659 = vmatprep.subr.bf16.mxu0 0
    %660 = vmatpush1.bf16.msra.mxu0 0
    %661 = vmatprep.subr.bf16.mxu0 0
    %662 = vmatpush1.bf16.msra.mxu0 0
    %663 = vmatprep.subr.bf16.mxu0 0
    %664 = vmatpush1.bf16.msra.mxu0 0
    %665 = vmatprep.subr.bf16.mxu0 0
    %666 = vmatpush1.bf16.msra.mxu0 0
    %667 = vmatprep.subr.bf16.mxu0 0
    %668 = vmatpush1.bf16.msra.mxu0 0
    %669 = vmatprep.mubr.bf16.mxu0 0
    %670 = vmatmul.mubr.bf16.gmra.mrb[0].mxu0 %v635
    %v671 = vpop.f32.mrb[0].mxu0
    %v672 = vadd.f32 0.0, %v671
    %v673 = vpop.f32.mrb[0].mxu0
    %v674 = vadd.f32 0.0, %v673
    %v675 = vpop.f32.mrb[0].mxu0
    %v676 = vpop.f32.mrb[0].mxu0
    %677 = vdwg.mxu0
    %v679 = vsel %vm271, %v554, 0
    %681 = vmatprep.subr.bf16.mxu0 %v466
    %682 = vmatpush1.bf16.msra.mxu0 %v465
    %683 = vmatprep.subr.bf16.mxu0 %v468
    %684 = vmatpush1.bf16.msra.mxu0 %v467
    %685 = vmatprep.subr.bf16.mxu0 %v470
    %686 = vmatpush1.bf16.msra.mxu0 %v469
    %687 = vmatprep.subr.bf16.mxu0 %v472
    %688 = vmatpush1.bf16.msra.mxu0 %v471
    %689 = vmatprep.subr.bf16.mxu0 0
    %690 = vmatpush1.bf16.msra.mxu0 0
    %691 = vmatprep.subr.bf16.mxu0 0
    %692 = vmatpush1.bf16.msra.mxu0 0
    %693 = vmatprep.subr.bf16.mxu0 0
    %694 = vmatpush1.bf16.msra.mxu0 0
    %695 = vmatprep.subr.bf16.mxu0 0
    %696 = vmatpush1.bf16.msra.mxu0 0
    %697 = vmatprep.subr.bf16.mxu0 0
    %698 = vmatpush1.bf16.msra.mxu0 0
    %699 = vmatprep.subr.bf16.mxu0 0
    %700 = vmatpush1.bf16.msra.mxu0 0
    %701 = vmatprep.subr.bf16.mxu0 0
    %702 = vmatpush1.bf16.msra.mxu0 0
    %703 = vmatprep.subr.bf16.mxu0 0
    %704 = vmatpush1.bf16.msra.mxu0 0
    %705 = vmatprep.subr.bf16.mxu0 0
    %706 = vmatpush1.bf16.msra.mxu0 0
    %707 = vmatprep.subr.bf16.mxu0 0
    %708 = vmatpush1.bf16.msra.mxu0 0
    %709 = vmatprep.subr.bf16.mxu0 0
    %710 = vmatpush1.bf16.msra.mxu0 0
    %711 = vmatprep.subr.bf16.mxu0 0
    %712 = vmatpush1.bf16.msra.mxu0 0
    %713 = vmatprep.mubr.bf16.mxu0 0
    %714 = vmatmul.mubr.bf16.gmra.mrb[0].mxu0 %v679
    %v715 = vpop.f32.mrb[0].mxu0
    %v716 = vadd.f32 %v672, %v715
    %v717 = vpop.f32.mrb[0].mxu0
    %v718 = vadd.f32 %v674, %v717
    %v719 = vpop.f32.mrb[0].mxu0
    %v720 = vpop.f32.mrb[0].mxu0
    %721 = vdwg.mxu0
    %v722 = vadd.f32 %v716, %v203
    %v723 = vadd.f32 %v718, %v207
    %v724 = vxor.u32 %v722, 2147483648
    %v725 = vxor.u32 %v723, 2147483648
    %v726 = vmul.f32 %v724, 1.442695
    %v727 = vpow.pop %v726
    %v728 = vmul.f32 %v725, 1.442695
    %v729 = vpow.pop %v728
    %v730 = vadd.f32 %v727, 1.0
    %v731 = vadd.f32 %v729, 1.0
    %v732 = vrcp.pop %v730
    %v733 = vmul.f32 1.0, %v732
    %v734 = vrcp.pop %v731
    %v735 = vmul.f32 1.0, %v734
    %v736 = vtanh.pop %v723
    %v737 = vmul.f32 %v733, %v547
    %739 = vrot.lane.b32.xlu0 %v736, 64
    %v740 = vpop.permute.xlu0 %739
    %v742 = vmul.f32 %v733, %v740
    %744 = vrot.lane.b32.xlu0 %v742, 64
    %v745 = vpop.permute.xlu0 %744
    %v747 = vadd.f32 %v737, %v745
    %v748 = vtanh.pop %v747
    %750 = vrot.lane.b32.xlu0 %v748, 64
    %v751 = vpop.permute.xlu0 %750
    %v753 = vmul.f32 %v735, %v751
    %v754 = vpack.c.bf16 %v753, %v753
    %s755 = smul.u32 2, 2
    %s756 = smul.addr %s755, 8
    %s757 = scalar_lea.vmem [#allocation2], %s756
    %v758 = vld [vmem:[%s757] sm:$0xff]
    %v759 = vld [vmem:[%s757 + $0x8] sm:$0xff]
    %760 = vmatprep.subr.bf16.mxu0 %v256
    %761 = vmatpush1.bf16.msra.mxu0 %v255
    %762 = vmatprep.subr.bf16.mxu0 %v258
    %763 = vmatpush1.bf16.msra.mxu0 %v257
    %764 = vmatprep.subr.bf16.mxu0 %v260
    %765 = vmatpush1.bf16.msra.mxu0 %v259
    %766 = vmatprep.subr.bf16.mxu0 %v262
    %767 = vmatpush1.bf16.msra.mxu0 %v261
    %768 = vmatprep.subr.bf16.mxu0 0
    %769 = vmatpush1.bf16.msra.mxu0 0
    %770 = vmatprep.subr.bf16.mxu0 0
    %771 = vmatpush1.bf16.msra.mxu0 0
    %772 = vmatprep.subr.bf16.mxu0 0
    %773 = vmatpush1.bf16.msra.mxu0 0
    %774 = vmatprep.subr.bf16.mxu0 0
    %775 = vmatpush1.bf16.msra.mxu0 0
    %776 = vmatprep.subr.bf16.mxu0 0
    %777 = vmatpush1.bf16.msra.mxu0 0
    %778 = vmatprep.subr.bf16.mxu0 0
    %779 = vmatpush1.bf16.msra.mxu0 0
    %780 = vmatprep.subr.bf16.mxu0 0
    %781 = vmatpush1.bf16.msra.mxu0 0
    %782 = vmatprep.subr.bf16.mxu0 0
    %783 = vmatpush1.bf16.msra.mxu0 0
    %784 = vmatprep.subr.bf16.mxu0 0
    %785 = vmatpush1.bf16.msra.mxu0 0
    %786 = vmatprep.subr.bf16.mxu0 0
    %787 = vmatpush1.bf16.msra.mxu0 0
    %788 = vmatprep.subr.bf16.mxu0 0
    %789 = vmatpush1.bf16.msra.mxu0 0
    %790 = vmatprep.subr.bf16.mxu0 0
    %791 = vmatpush1.bf16.msra.mxu0 0
    %792 = vmatprep.mubr.bf16.mxu0 0
    %793 = vmatmul.mubr.bf16.gmra.mrb[0].mxu0 %v635
    %v794 = vpop.f32.mrb[0].mxu0
    %v795 = vadd.f32 0.0, %v794
    %v796 = vpop.f32.mrb[0].mxu0
    %v797 = vadd.f32 0.0, %v796
    %v798 = vpop.f32.mrb[0].mxu0
    %v799 = vpop.f32.mrb[0].mxu0
    %800 = vdwg.mxu0
    %v801 = vadd.f32 %v758, %v795
    %v802 = vadd.f32 %v759, %v797
    %v803 = vxor.u32 %v801, 2147483648
    %v804 = vxor.u32 %v802, 2147483648
    %v805 = vmul.f32 %v803, 1.442695
    %v806 = vpow.pop %v805
    %v807 = vmul.f32 %v804, 1.442695
    %v808 = vpow.pop %v807
    %v809 = vadd.f32 %v806, 1.0
    %v810 = vadd.f32 %v808, 1.0
    %v811 = vrcp.pop %v809
    %v812 = vmul.f32 1.0, %v811
    %v813 = vrcp.pop %v810
    %v814 = vmul.f32 1.0, %v813
    %v815 = vtanh.pop %v802
    %v816 = vmul.f32 %v812, %v626
    %818 = vrot.lane.b32.xlu0 %v815, 64
    %v819 = vpop.permute.xlu0 %818
    %v821 = vmul.f32 %v812, %v819
    %823 = vrot.lane.b32.xlu0 %v821, 64
    %v824 = vpop.permute.xlu0 %823
    %v826 = vadd.f32 %v816, %v824
    %v827 = vtanh.pop %v826
    %829 = vrot.lane.b32.xlu0 %v827, 64
    %v830 = vpop.permute.xlu0 %829
    %v832 = vmul.f32 %v814, %v830
    %v833 = vpack.c.bf16 %v832, %v832
    %v835 = vsel %vm271, %v833, 0
    %837 = vmatprep.subr.bf16.mxu0 %v382
    %838 = vmatpush1.bf16.msra.mxu0 %v381
    %839 = vmatprep.subr.bf16.mxu0 %v384
    %840 = vmatpush1.bf16.msra.mxu0 %v383
    %841 = vmatprep.subr.bf16.mxu0 %v386
    %842 = vmatpush1.bf16.msra.mxu0 %v385
    %843 = vmatprep.subr.bf16.mxu0 %v388
    %844 = vmatpush1.bf16.msra.mxu0 %v387
    %845 = vmatprep.subr.bf16.mxu0 0
    %846 = vmatpush1.bf16.msra.mxu0 0
    %847 = vmatprep.subr.bf16.mxu0 0
    %848 = vmatpush1.bf16.msra.mxu0 0
    %849 = vmatprep.subr.bf16.mxu0 0
    %850 = vmatpush1.bf16.msra.mxu0 0
    %851 = vmatprep.subr.bf16.mxu0 0
    %852 = vmatpush1.bf16.msra.mxu0 0
    %853 = vmatprep.subr.bf16.mxu0 0
    %854 = vmatpush1.bf16.msra.mxu0 0
    %855 = vmatprep.subr.bf16.mxu0 0
    %856 = vmatpush1.bf16.msra.mxu0 0
    %857 = vmatprep.subr.bf16.mxu0 0
    %858 = vmatpush1.bf16.msra.mxu0 0
    %859 = vmatprep.subr.bf16.mxu0 0
    %860 = vmatpush1.bf16.msra.mxu0 0
    %861 = vmatprep.subr.bf16.mxu0 0
    %862 = vmatpush1.bf16.msra.mxu0 0
    %863 = vmatprep.subr.bf16.mxu0 0
    %864 = vmatpush1.bf16.msra.mxu0 0
    %865 = vmatprep.subr.bf16.mxu0 0
    %866 = vmatpush1.bf16.msra.mxu0 0
    %867 = vmatprep.subr.bf16.mxu0 0
    %868 = vmatpush1.bf16.msra.mxu0 0
    %869 = vmatprep.mubr.bf16.mxu0 0
    %870 = vmatmul.mubr.bf16.gmra.mrb[0].mxu0 %v835
    %v871 = vpop.f32.mrb[0].mxu0
    %v872 = vadd.f32 0.0, %v871
    %v873 = vpop.f32.mrb[0].mxu0
    %v874 = vadd.f32 0.0, %v873
    %v875 = vpop.f32.mrb[0].mxu0
    %v876 = vpop.f32.mrb[0].mxu0
    %877 = vdwg.mxu0
    %v879 = vsel %vm271, %v754, 0
    %881 = vmatprep.subr.bf16.mxu0 %v466
    %882 = vmatpush1.bf16.msra.mxu0 %v465
    %883 = vmatprep.subr.bf16.mxu0 %v468
    %884 = vmatpush1.bf16.msra.mxu0 %v467
    %885 = vmatprep.subr.bf16.mxu0 %v470
    %886 = vmatpush1.bf16.msra.mxu0 %v469
    %887 = vmatprep.subr.bf16.mxu0 %v472
    %888 = vmatpush1.bf16.msra.mxu0 %v471
    %889 = vmatprep.subr.bf16.mxu0 0
    %890 = vmatpush1.bf16.msra.mxu0 0
    %891 = vmatprep.subr.bf16.mxu0 0
    %892 = vmatpush1.bf16.msra.mxu0 0
    %893 = vmatprep.subr.bf16.mxu0 0
    %894 = vmatpush1.bf16.msra.mxu0 0
    %895 = vmatprep.subr.bf16.mxu0 0
    %896 = vmatpush1.bf16.msra.mxu0 0
    %897 = vmatprep.subr.bf16.mxu0 0
    %898 = vmatpush1.bf16.msra.mxu0 0
    %899 = vmatprep.subr.bf16.mxu0 0
    %900 = vmatpush1.bf16.msra.mxu0 0
    %901 = vmatprep.subr.bf16.mxu0 0
    %902 = vmatpush1.bf16.msra.mxu0 0
    %903 = vmatprep.subr.bf16.mxu0 0
    %904 = vmatpush1.bf16.msra.mxu0 0
    %905 = vmatprep.subr.bf16.mxu0 0
    %906 = vmatpush1.bf16.msra.mxu0 0
    %907 = vmatprep.subr.bf16.mxu0 0
    %908 = vmatpush1.bf16.msra.mxu0 0
    %909 = vmatprep.subr.bf16.mxu0 0
    %910 = vmatpush1.bf16.msra.mxu0 0
    %911 = vmatprep.subr.bf16.mxu0 0
    %912 = vmatpush1.bf16.msra.mxu0 0
    %913 = vmatprep.mubr.bf16.mxu0 0
    %914 = vmatmul.mubr.bf16.gmra.mrb[0].mxu0 %v879
    %v915 = vpop.f32.mrb[0].mxu0
    %v916 = vadd.f32 %v872, %v915
    %v917 = vpop.f32.mrb[0].mxu0
    %v918 = vadd.f32 %v874, %v917
    %v919 = vpop.f32.mrb[0].mxu0
    %v920 = vpop.f32.mrb[0].mxu0
    %921 = vdwg.mxu0
    %v922 = vadd.f32 %v916, %v203
    %v923 = vadd.f32 %v918, %v207
    %v924 = vxor.u32 %v922, 2147483648
    %v925 = vxor.u32 %v923, 2147483648
    %v926 = vmul.f32 %v924, 1.442695
    %v927 = vpow.pop %v926
    %v928 = vmul.f32 %v925, 1.442695
    %v929 = vpow.pop %v928
    %v930 = vadd.f32 %v927, 1.0
    %v931 = vadd.f32 %v929, 1.0
    %v932 = vrcp.pop %v930
    %v933 = vmul.f32 1.0, %v932
    %v934 = vrcp.pop %v931
    %v935 = vmul.f32 1.0, %v934
    %v936 = vtanh.pop %v923
    %v937 = vmul.f32 %v933, %v747
    %939 = vrot.lane.b32.xlu0 %v936, 64
    %v940 = vpop.permute.xlu0 %939
    %v942 = vmul.f32 %v933, %v940
    %944 = vrot.lane.b32.xlu0 %v942, 64
    %v945 = vpop.permute.xlu0 %944
    %v947 = vadd.f32 %v937, %v945
    %v948 = vtanh.pop %v947
    %950 = vrot.lane.b32.xlu0 %v948, 64
    %v951 = vpop.permute.xlu0 %950
    %v953 = vmul.f32 %v935, %v951
    %v954 = vpack.c.bf16 %v953, %v953
    %s955 = smul.u32 3, 2
    %s956 = smul.addr %s955, 8
    %s957 = scalar_lea.vmem [#allocation2], %s956
    %v958 = vld [vmem:[%s957] sm:$0xff]
    %v959 = vld [vmem:[%s957 + $0x8] sm:$0xff]
    %960 = vmatprep.subr.bf16.mxu0 %v256
    %961 = vmatpush1.bf16.msra.mxu0 %v255
    %962 = vmatprep.subr.bf16.mxu0 %v258
    %963 = vmatpush1.bf16.msra.mxu0 %v257
    %964 = vmatprep.subr.bf16.mxu0 %v260
    %965 = vmatpush1.bf16.msra.mxu0 %v259
    %966 = vmatprep.subr.bf16.mxu0 %v262
    %967 = vmatpush1.bf16.msra.mxu0 %v261
    %968 = vmatprep.subr.bf16.mxu0 0
    %969 = vmatpush1.bf16.msra.mxu0 0
    %970 = vmatprep.subr.bf16.mxu0 0
    %971 = vmatpush1.bf16.msra.mxu0 0
    %972 = vmatprep.subr.bf16.mxu0 0
    %973 = vmatpush1.bf16.msra.mxu0 0
    %974 = vmatprep.subr.bf16.mxu0 0
    %975 = vmatpush1.bf16.msra.mxu0 0
    %976 = vmatprep.subr.bf16.mxu0 0
    %977 = vmatpush1.bf16.msra.mxu0 0
    %978 = vmatprep.subr.bf16.mxu0 0
    %979 = vmatpush1.bf16.msra.mxu0 0
    %980 = vmatprep.subr.bf16.mxu0 0
    %981 = vmatpush1.bf16.msra.mxu0 0
    %982 = vmatprep.subr.bf16.mxu0 0
    %983 = vmatpush1.bf16.msra.mxu0 0
    %984 = vmatprep.subr.bf16.mxu0 0
    %985 = vmatpush1.bf16.msra.mxu0 0
    %986 = vmatprep.subr.bf16.mxu0 0
    %987 = vmatpush1.bf16.msra.mxu0 0
    %988 = vmatprep.subr.bf16.mxu0 0
    %989 = vmatpush1.bf16.msra.mxu0 0
    %990 = vmatprep.subr.bf16.mxu0 0
    %991 = vmatpush1.bf16.msra.mxu0 0
    %992 = vmatprep.mubr.bf16.mxu0 0
    %993 = vmatmul.mubr.bf16.gmra.mrb[0].mxu0 %v835
    %v994 = vpop.f32.mrb[0].mxu0
    %v995 = vadd.f32 0.0, %v994
    %v996 = vpop.f32.mrb[0].mxu0
    %v997 = vadd.f32 0.0, %v996
    %v998 = vpop.f32.mrb[0].mxu0
    %v999 = vpop.f32.mrb[0].mxu0
    %1000 = vdwg.mxu0
    %v1001 = vadd.f32 %v958, %v995
    %v1002 = vadd.f32 %v959, %v997
    %v1003 = vxor.u32 %v1001, 2147483648
    %v1004 = vxor.u32 %v1002, 2147483648
    %v1005 = vmul.f32 %v1003, 1.442695
    %v1006 = vpow.pop %v1005
    %v1007 = vmul.f32 %v1004, 1.442695
    %v1008 = vpow.pop %v1007
    %v1009 = vadd.f32 %v1006, 1.0
    %v1010 = vadd.f32 %v1008, 1.0
    %v1011 = vrcp.pop %v1009
    %v1012 = vmul.f32 1.0, %v1011
    %v1013 = vrcp.pop %v1010
    %v1014 = vmul.f32 1.0, %v1013
    %v1015 = vtanh.pop %v1002
    %v1016 = vmul.f32 %v1012, %v826
    %1018 = vrot.lane.b32.xlu0 %v1015, 64
    %v1019 = vpop.permute.xlu0 %1018
    %v1021 = vmul.f32 %v1012, %v1019
    %1023 = vrot.lane.b32.xlu0 %v1021, 64
    %v1024 = vpop.permute.xlu0 %1023
    %v1026 = vadd.f32 %v1016, %v1024
    %v1027 = vtanh.pop %v1026
    %1029 = vrot.lane.b32.xlu0 %v1027, 64
    %v1030 = vpop.permute.xlu0 %1029
    %v1032 = vmul.f32 %v1014, %v1030
    %v1033 = vpack.c.bf16 %v1032, %v1032
    %v1035 = vsel %vm271, %v1033, 0
    %1037 = vmatprep.subr.bf16.mxu0 %v382
    %1038 = vmatpush1.bf16.msra.mxu0 %v381
    %1039 = vmatprep.subr.bf16.mxu0 %v384
    %1040 = vmatpush1.bf16.msra.mxu0 %v383
    %1041 = vmatprep.subr.bf16.mxu0 %v386
    %1042 = vmatpush1.bf16.msra.mxu0 %v385
    %1043 = vmatprep.subr.bf16.mxu0 %v388
    %1044 = vmatpush1.bf16.msra.mxu0 %v387
    %1045 = vmatprep.subr.bf16.mxu0 0
    %1046 = vmatpush1.bf16.msra.mxu0 0
    %1047 = vmatprep.subr.bf16.mxu0 0
    %1048 = vmatpush1.bf16.msra.mxu0 0
    %1049 = vmatprep.subr.bf16.mxu0 0
    %1050 = vmatpush1.bf16.msra.mxu0 0
    %1051 = vmatprep.subr.bf16.mxu0 0
    %1052 = vmatpush1.bf16.msra.mxu0 0
    %1053 = vmatprep.subr.bf16.mxu0 0
    %1054 = vmatpush1.bf16.msra.mxu0 0
    %1055 = vmatprep.subr.bf16.mxu0 0
    %1056 = vmatpush1.bf16.msra.mxu0 0
    %1057 = vmatprep.subr.bf16.mxu0 0
    %1058 = vmatpush1.bf16.msra.mxu0 0
    %1059 = vmatprep.subr.bf16.mxu0 0
    %1060 = vmatpush1.bf16.msra.mxu0 0
    %1061 = vmatprep.subr.bf16.mxu0 0
    %1062 = vmatpush1.bf16.msra.mxu0 0
    %1063 = vmatprep.subr.bf16.mxu0 0
    %1064 = vmatpush1.bf16.msra.mxu0 0
    %1065 = vmatprep.subr.bf16.mxu0 0
    %1066 = vmatpush1.bf16.msra.mxu0 0
    %1067 = vmatprep.subr.bf16.mxu0 0
    %1068 = vmatpush1.bf16.msra.mxu0 0
    %1069 = vmatprep.mubr.bf16.mxu0 0
    %1070 = vmatmul.mubr.bf16.gmra.mrb[0].mxu0 %v1035
    %v1071 = vpop.f32.mrb[0].mxu0
    %v1072 = vadd.f32 0.0, %v1071
    %v1073 = vpop.f32.mrb[0].mxu0
    %v1074 = vadd.f32 0.0, %v1073
    %v1075 = vpop.f32.mrb[0].mxu0
    %v1076 = vpop.f32.mrb[0].mxu0
    %1077 = vdwg.mxu0
    %v1079 = vsel %vm271, %v954, 0
    %1081 = vmatprep.subr.bf16.mxu0 %v466
    %1082 = vmatpush1.bf16.msra.mxu0 %v465
    %1083 = vmatprep.subr.bf16.mxu0 %v468
    %1084 = vmatpush1.bf16.msra.mxu0 %v467
    %1085 = vmatprep.subr.bf16.mxu0 %v470
    %1086 = vmatpush1.bf16.msra.mxu0 %v469
    %1087 = vmatprep.subr.bf16.mxu0 %v472
    %1088 = vmatpush1.bf16.msra.mxu0 %v471
    %1089 = vmatprep.subr.bf16.mxu0 0
    %1090 = vmatpush1.bf16.msra.mxu0 0
    %1091 = vmatprep.subr.bf16.mxu0 0
    %1092 = vmatpush1.bf16.msra.mxu0 0
    %1093 = vmatprep.subr.bf16.mxu0 0
    %1094 = vmatpush1.bf16.msra.mxu0 0
    %1095 = vmatprep.subr.bf16.mxu0 0
    %1096 = vmatpush1.bf16.msra.mxu0 0
    %1097 = vmatprep.subr.bf16.mxu0 0
    %1098 = vmatpush1.bf16.msra.mxu0 0
    %1099 = vmatprep.subr.bf16.mxu0 0
    %1100 = vmatpush1.bf16.msra.mxu0 0
    %1101 = vmatprep.subr.bf16.mxu0 0
    %1102 = vmatpush1.bf16.msra.mxu0 0
    %1103 = vmatprep.subr.bf16.mxu0 0
    %1104 = vmatpush1.bf16.msra.mxu0 0
    %1105 = vmatprep.subr.bf16.mxu0 0
    %1106 = vmatpush1.bf16.msra.mxu0 0
    %1107 = vmatprep.subr.bf16.mxu0 0
    %1108 = vmatpush1.bf16.msra.mxu0 0
    %1109 = vmatprep.subr.bf16.mxu0 0
    %1110 = vmatpush1.bf16.msra.mxu0 0
    %1111 = vmatprep.subr.bf16.mxu0 0
    %1112 = vmatpush1.bf16.msra.mxu0 0
    %1113 = vmatprep.mubr.bf16.mxu0 0
    %1114 = vmatmul.mubr.bf16.gmra.mrb[0].mxu0 %v1079
    %v1115 = vpop.f32.mrb[0].mxu0
    %v1116 = vadd.f32 %v1072, %v1115
    %v1117 = vpop.f32.mrb[0].mxu0
    %v1118 = vadd.f32 %v1074, %v1117
    %v1119 = vpop.f32.mrb[0].mxu0
    %v1120 = vpop.f32.mrb[0].mxu0
    %1121 = vdwg.mxu0
    %v1122 = vadd.f32 %v1116, %v203
    %v1123 = vadd.f32 %v1118, %v207
    %v1124 = vxor.u32 %v1122, 2147483648
    %v1125 = vxor.u32 %v1123, 2147483648
    %v1126 = vmul.f32 %v1124, 1.442695
    %v1127 = vpow.pop %v1126
    %v1128 = vmul.f32 %v1125, 1.442695
    %v1129 = vpow.pop %v1128
    %v1130 = vadd.f32 %v1127, 1.0
    %v1131 = vadd.f32 %v1129, 1.0
    %v1132 = vrcp.pop %v1130
    %v1133 = vmul.f32 1.0, %v1132
    %v1134 = vrcp.pop %v1131
    %v1135 = vmul.f32 1.0, %v1134
    %v1136 = vtanh.pop %v1123
    %v1137 = vmul.f32 %v1133, %v947
    %1139 = vrot.lane.b32.xlu0 %v1136, 64
    %v1140 = vpop.permute.xlu0 %1139
    %v1142 = vmul.f32 %v1133, %v1140
    %1144 = vrot.lane.b32.xlu0 %v1142, 64
    %v1145 = vpop.permute.xlu0 %1144
    %v1147 = vadd.f32 %v1137, %v1145
    %v1148 = vtanh.pop %v1147
    %1150 = vrot.lane.b32.xlu0 %v1148, 64
    %v1151 = vpop.permute.xlu0 %1150
    %v1153 = vmul.f32 %v1135, %v1151
    %v1154 = vpack.c.bf16 %v1153, %v1153
    %s1155 = smul.u32 4, 2
    %s1156 = smul.addr %s1155, 8
    %s1157 = scalar_lea.vmem [#allocation2], %s1156
    %v1158 = vld [vmem:[%s1157] sm:$0xff]
    %v1159 = vld [vmem:[%s1157 + $0x8] sm:$0xff]
    %1160 = vmatprep.subr.bf16.mxu0 %v256
    %1161 = vmatpush1.bf16.msra.mxu0 %v255
    %1162 = vmatprep.subr.bf16.mxu0 %v258
    %1163 = vmatpush1.bf16.msra.mxu0 %v257
    %1164 = vmatprep.subr.bf16.mxu0 %v260
    %1165 = vmatpush1.bf16.msra.mxu0 %v259
    %1166 = vmatprep.subr.bf16.mxu0 %v262
    %1167 = vmatpush1.bf16.msra.mxu0 %v261
    %1168 = vmatprep.subr.bf16.mxu0 0
    %1169 = vmatpush1.bf16.msra.mxu0 0
    %1170 = vmatprep.subr.bf16.mxu0 0
    %1171 = vmatpush1.bf16.msra.mxu0 0
    %1172 = vmatprep.subr.bf16.mxu0 0
    %1173 = vmatpush1.bf16.msra.mxu0 0
    %1174 = vmatprep.subr.bf16.mxu0 0
    %1175 = vmatpush1.bf16.msra.mxu0 0
    %1176 = vmatprep.subr.bf16.mxu0 0
    %1177 = vmatpush1.bf16.msra.mxu0 0
    %1178 = vmatprep.subr.bf16.mxu0 0
    %1179 = vmatpush1.bf16.msra.mxu0 0
    %1180 = vmatprep.subr.bf16.mxu0 0
    %1181 = vmatpush1.bf16.msra.mxu0 0
    %1182 = vmatprep.subr.bf16.mxu0 0
    %1183 = vmatpush1.bf16.msra.mxu0 0
    %1184 = vmatprep.subr.bf16.mxu0 0
    %1185 = vmatpush1.bf16.msra.mxu0 0
    %1186 = vmatprep.subr.bf16.mxu0 0
    %1187 = vmatpush1.bf16.msra.mxu0 0
    %1188 = vmatprep.subr.bf16.mxu0 0
    %1189 = vmatpush1.bf16.msra.mxu0 0
    %1190 = vmatprep.subr.bf16.mxu0 0
    %1191 = vmatpush1.bf16.msra.mxu0 0
    %1192 = vmatprep.mubr.bf16.mxu0 0
    %1193 = vmatmul.mubr.bf16.gmra.mrb[0].mxu0 %v1035
    %v1194 = vpop.f32.mrb[0].mxu0
    %v1195 = vadd.f32 0.0, %v1194
    %v1196 = vpop.f32.mrb[0].mxu0
    %v1197 = vadd.f32 0.0, %v1196
    %v1198 = vpop.f32.mrb[0].mxu0
    %v1199 = vpop.f32.mrb[0].mxu0
    %1200 = vdwg.mxu0
    %v1201 = vadd.f32 %v1158, %v1195
    %v1202 = vadd.f32 %v1159, %v1197
    %v1203 = vxor.u32 %v1201, 2147483648
    %v1204 = vxor.u32 %v1202, 2147483648
    %v1205 = vmul.f32 %v1203, 1.442695
    %v1206 = vpow.pop %v1205
    %v1207 = vmul.f32 %v1204, 1.442695
    %v1208 = vpow.pop %v1207
    %v1209 = vadd.f32 %v1206, 1.0
    %v1210 = vadd.f32 %v1208, 1.0
    %v1211 = vrcp.pop %v1209
    %v1212 = vmul.f32 1.0, %v1211
    %v1213 = vrcp.pop %v1210
    %v1214 = vmul.f32 1.0, %v1213
    %v1215 = vtanh.pop %v1202
    %v1216 = vmul.f32 %v1212, %v1026
    %1218 = vrot.lane.b32.xlu0 %v1215, 64
    %v1219 = vpop.permute.xlu0 %1218
    %v1221 = vmul.f32 %v1212, %v1219
    %1223 = vrot.lane.b32.xlu0 %v1221, 64
    %v1224 = vpop.permute.xlu0 %1223
    %v1226 = vadd.f32 %v1216, %v1224
    %v1227 = vtanh.pop %v1226
    %1229 = vrot.lane.b32.xlu0 %v1227, 64
    %v1230 = vpop.permute.xlu0 %1229
    %v1232 = vmul.f32 %v1214, %v1230
    %v1233 = vpack.c.bf16 %v1232, %v1232
    %v1235 = vsel %vm271, %v1233, 0
    %1237 = vmatprep.subr.bf16.mxu0 %v382
    %1238 = vmatpush1.bf16.msra.mxu0 %v381
    %1239 = vmatprep.subr.bf16.mxu0 %v384
    %1240 = vmatpush1.bf16.msra.mxu0 %v383
    %1241 = vmatprep.subr.bf16.mxu0 %v386
    %1242 = vmatpush1.bf16.msra.mxu0 %v385
    %1243 = vmatprep.subr.bf16.mxu0 %v388
    %1244 = vmatpush1.bf16.msra.mxu0 %v387
    %1245 = vmatprep.subr.bf16.mxu0 0
    %1246 = vmatpush1.bf16.msra.mxu0 0
    %1247 = vmatprep.subr.bf16.mxu0 0
    %1248 = vmatpush1.bf16.msra.mxu0 0
    %1249 = vmatprep.subr.bf16.mxu0 0
    %1250 = vmatpush1.bf16.msra.mxu0 0
    %1251 = vmatprep.subr.bf16.mxu0 0
    %1252 = vmatpush1.bf16.msra.mxu0 0
    %1253 = vmatprep.subr.bf16.mxu0 0
    %1254 = vmatpush1.bf16.msra.mxu0 0
    %1255 = vmatprep.subr.bf16.mxu0 0
    %1256 = vmatpush1.bf16.msra.mxu0 0
    %1257 = vmatprep.subr.bf16.mxu0 0
    %1258 = vmatpush1.bf16.msra.mxu0 0
    %1259 = vmatprep.subr.bf16.mxu0 0
    %1260 = vmatpush1.bf16.msra.mxu0 0
    %1261 = vmatprep.subr.bf16.mxu0 0
    %1262 = vmatpush1.bf16.msra.mxu0 0
    %1263 = vmatprep.subr.bf16.mxu0 0
    %1264 = vmatpush1.bf16.msra.mxu0 0
    %1265 = vmatprep.subr.bf16.mxu0 0
    %1266 = vmatpush1.bf16.msra.mxu0 0
    %1267 = vmatprep.subr.bf16.mxu0 0
    %1268 = vmatpush1.bf16.msra.mxu0 0
    %1269 = vmatprep.mubr.bf16.mxu0 0
    %1270 = vmatmul.mubr.bf16.gmra.mrb[0].mxu0 %v1235
    %v1271 = vpop.f32.mrb[0].mxu0
    %v1272 = vadd.f32 0.0, %v1271
    %v1273 = vpop.f32.mrb[0].mxu0
    %v1274 = vadd.f32 0.0, %v1273
    %v1275 = vpop.f32.mrb[0].mxu0
    %v1276 = vpop.f32.mrb[0].mxu0
    %1277 = vdwg.mxu0
    %v1279 = vsel %vm271, %v1154, 0
    %1281 = vmatprep.subr.bf16.mxu0 %v466
    %1282 = vmatpush1.bf16.msra.mxu0 %v465
    %1283 = vmatprep.subr.bf16.mxu0 %v468
    %1284 = vmatpush1.bf16.msra.mxu0 %v467
    %1285 = vmatprep.subr.bf16.mxu0 %v470
    %1286 = vmatpush1.bf16.msra.mxu0 %v469
    %1287 = vmatprep.subr.bf16.mxu0 %v472
    %1288 = vmatpush1.bf16.msra.mxu0 %v471
    %1289 = vmatprep.subr.bf16.mxu0 0
    %1290 = vmatpush1.bf16.msra.mxu0 0
    %1291 = vmatprep.subr.bf16.mxu0 0
    %1292 = vmatpush1.bf16.msra.mxu0 0
    %1293 = vmatprep.subr.bf16.mxu0 0
    %1294 = vmatpush1.bf16.msra.mxu0 0
    %1295 = vmatprep.subr.bf16.mxu0 0
    %1296 = vmatpush1.bf16.msra.mxu0 0
    %1297 = vmatprep.subr.bf16.mxu0 0
    %1298 = vmatpush1.bf16.msra.mxu0 0
    %1299 = vmatprep.subr.bf16.mxu0 0
    %1300 = vmatpush1.bf16.msra.mxu0 0
    %1301 = vmatprep.subr.bf16.mxu0 0
    %1302 = vmatpush1.bf16.msra.mxu0 0
    %1303 = vmatprep.subr.bf16.mxu0 0
    %1304 = vmatpush1.bf16.msra.mxu0 0
    %1305 = vmatprep.subr.bf16.mxu0 0
    %1306 = vmatpush1.bf16.msra.mxu0 0
    %1307 = vmatprep.subr.bf16.mxu0 0
    %1308 = vmatpush1.bf16.msra.mxu0 0
    %1309 = vmatprep.subr.bf16.mxu0 0
    %1310 = vmatpush1.bf16.msra.mxu0 0
    %1311 = vmatprep.subr.bf16.mxu0 0
    %1312 = vmatpush1.bf16.msra.mxu0 0
    %1313 = vmatprep.mubr.bf16.mxu0 0
    %1314 = vmatmul.mubr.bf16.gmra.mrb[0].mxu0 %v1279
    %v1315 = vpop.f32.mrb[0].mxu0
    %v1316 = vadd.f32 %v1272, %v1315
    %v1317 = vpop.f32.mrb[0].mxu0
    %v1318 = vadd.f32 %v1274, %v1317
    %v1319 = vpop.f32.mrb[0].mxu0
    %v1320 = vpop.f32.mrb[0].mxu0
    %1321 = vdwg.mxu0
    %v1322 = vadd.f32 %v1316, %v203
    %v1323 = vadd.f32 %v1318, %v207
    %v1324 = vxor.u32 %v1322, 2147483648
    %v1325 = vxor.u32 %v1323, 2147483648
    %v1326 = vmul.f32 %v1324, 1.442695
    %v1327 = vpow.pop %v1326
    %v1328 = vmul.f32 %v1325, 1.442695
    %v1329 = vpow.pop %v1328
    %v1330 = vadd.f32 %v1327, 1.0
    %v1331 = vadd.f32 %v1329, 1.0
    %v1332 = vrcp.pop %v1330
    %v1333 = vmul.f32 1.0, %v1332
    %v1334 = vrcp.pop %v1331
    %v1335 = vmul.f32 1.0, %v1334
    %v1336 = vtanh.pop %v1323
    %v1337 = vmul.f32 %v1333, %v1147
    %1339 = vrot.lane.b32.xlu0 %v1336, 64
    %v1340 = vpop.permute.xlu0 %1339
    %v1342 = vmul.f32 %v1333, %v1340
    %1344 = vrot.lane.b32.xlu0 %v1342, 64
    %v1345 = vpop.permute.xlu0 %1344
    %v1347 = vadd.f32 %v1337, %v1345
    %v1348 = vtanh.pop %v1347
    %1350 = vrot.lane.b32.xlu0 %v1348, 64
    %v1351 = vpop.permute.xlu0 %1350
    %v1353 = vmul.f32 %v1335, %v1351
    %v1354 = vpack.c.bf16 %v1353, %v1353
    %s1355 = smul.u32 5, 2
    %s1356 = smul.addr %s1355, 8
    %s1357 = scalar_lea.vmem [#allocation2], %s1356
    %v1358 = vld [vmem:[%s1357] sm:$0xff]
    %v1359 = vld [vmem:[%s1357 + $0x8] sm:$0xff]
    %1360 = vmatprep.subr.bf16.mxu0 %v256
    %1361 = vmatpush1.bf16.msra.mxu0 %v255
    %1362 = vmatprep.subr.bf16.mxu0 %v258
    %1363 = vmatpush1.bf16.msra.mxu0 %v257
    %1364 = vmatprep.subr.bf16.mxu0 %v260
    %1365 = vmatpush1.bf16.msra.mxu0 %v259
    %1366 = vmatprep.subr.bf16.mxu0 %v262
    %1367 = vmatpush1.bf16.msra.mxu0 %v261
    %1368 = vmatprep.subr.bf16.mxu0 0
    %1369 = vmatpush1.bf16.msra.mxu0 0
    %1370 = vmatprep.subr.bf16.mxu0 0
    %1371 = vmatpush1.bf16.msra.mxu0 0
    %1372 = vmatprep.subr.bf16.mxu0 0
    %1373 = vmatpush1.bf16.msra.mxu0 0
    %1374 = vmatprep.subr.bf16.mxu0 0
    %1375 = vmatpush1.bf16.msra.mxu0 0
    %1376 = vmatprep.subr.bf16.mxu0 0
    %1377 = vmatpush1.bf16.msra.mxu0 0
    %1378 = vmatprep.subr.bf16.mxu0 0
    %1379 = vmatpush1.bf16.msra.mxu0 0
    %1380 = vmatprep.subr.bf16.mxu0 0
    %1381 = vmatpush1.bf16.msra.mxu0 0
    %1382 = vmatprep.subr.bf16.mxu0 0
    %1383 = vmatpush1.bf16.msra.mxu0 0
    %1384 = vmatprep.subr.bf16.mxu0 0
    %1385 = vmatpush1.bf16.msra.mxu0 0
    %1386 = vmatprep.subr.bf16.mxu0 0
    %1387 = vmatpush1.bf16.msra.mxu0 0
    %1388 = vmatprep.subr.bf16.mxu0 0
    %1389 = vmatpush1.bf16.msra.mxu0 0
    %1390 = vmatprep.subr.bf16.mxu0 0
    %1391 = vmatpush1.bf16.msra.mxu0 0
    %1392 = vmatprep.mubr.bf16.mxu0 0
    %1393 = vmatmul.mubr.bf16.gmra.mrb[0].mxu0 %v1235
    %v1394 = vpop.f32.mrb[0].mxu0
    %v1395 = vadd.f32 0.0, %v1394
    %v1396 = vpop.f32.mrb[0].mxu0
    %v1397 = vadd.f32 0.0, %v1396
    %v1398 = vpop.f32.mrb[0].mxu0
    %v1399 = vpop.f32.mrb[0].mxu0
    %1400 = vdwg.mxu0
    %v1401 = vadd.f32 %v1358, %v1395
    %v1402 = vadd.f32 %v1359, %v1397
    %v1403 = vxor.u32 %v1401, 2147483648
    %v1404 = vxor.u32 %v1402, 2147483648
    %v1405 = vmul.f32 %v1403, 1.442695
    %v1406 = vpow.pop %v1405
    %v1407 = vmul.f32 %v1404, 1.442695
    %v1408 = vpow.pop %v1407
    %v1409 = vadd.f32 %v1406, 1.0
    %v1410 = vadd.f32 %v1408, 1.0
    %v1411 = vrcp.pop %v1409
    %v1412 = vmul.f32 1.0, %v1411
    %v1413 = vrcp.pop %v1410
    %v1414 = vmul.f32 1.0, %v1413
    %v1415 = vtanh.pop %v1402
    %v1416 = vmul.f32 %v1412, %v1226
    %1418 = vrot.lane.b32.xlu0 %v1415, 64
    %v1419 = vpop.permute.xlu0 %1418
    %v1421 = vmul.f32 %v1412, %v1419
    %1423 = vrot.lane.b32.xlu0 %v1421, 64
    %v1424 = vpop.permute.xlu0 %1423
    %v1426 = vadd.f32 %v1416, %v1424
    %v1427 = vtanh.pop %v1426
    %1429 = vrot.lane.b32.xlu0 %v1427, 64
    %v1430 = vpop.permute.xlu0 %1429
    %v1432 = vmul.f32 %v1414, %v1430
    %v1433 = vpack.c.bf16 %v1432, %v1432
    %v1435 = vsel %vm271, %v1433, 0
    %1437 = vmatprep.subr.bf16.mxu0 %v382
    %1438 = vmatpush1.bf16.msra.mxu0 %v381
    %1439 = vmatprep.subr.bf16.mxu0 %v384
    %1440 = vmatpush1.bf16.msra.mxu0 %v383
    %1441 = vmatprep.subr.bf16.mxu0 %v386
    %1442 = vmatpush1.bf16.msra.mxu0 %v385
    %1443 = vmatprep.subr.bf16.mxu0 %v388
    %1444 = vmatpush1.bf16.msra.mxu0 %v387
    %1445 = vmatprep.subr.bf16.mxu0 0
    %1446 = vmatpush1.bf16.msra.mxu0 0
    %1447 = vmatprep.subr.bf16.mxu0 0
    %1448 = vmatpush1.bf16.msra.mxu0 0
    %1449 = vmatprep.subr.bf16.mxu0 0
    %1450 = vmatpush1.bf16.msra.mxu0 0
    %1451 = vmatprep.subr.bf16.mxu0 0
    %1452 = vmatpush1.bf16.msra.mxu0 0
    %1453 = vmatprep.subr.bf16.mxu0 0
    %1454 = vmatpush1.bf16.msra.mxu0 0
    %1455 = vmatprep.subr.bf16.mxu0 0
    %1456 = vmatpush1.bf16.msra.mxu0 0
    %1457 = vmatprep.subr.bf16.mxu0 0
    %1458 = vmatpush1.bf16.msra.mxu0 0
    %1459 = vmatprep.subr.bf16.mxu0 0
    %1460 = vmatpush1.bf16.msra.mxu0 0
    %1461 = vmatprep.subr.bf16.mxu0 0
    %1462 = vmatpush1.bf16.msra.mxu0 0
    %1463 = vmatprep.subr.bf16.mxu0 0
    %1464 = vmatpush1.bf16.msra.mxu0 0
    %1465 = vmatprep.subr.bf16.mxu0 0
    %1466 = vmatpush1.bf16.msra.mxu0 0
    %1467 = vmatprep.subr.bf16.mxu0 0
    %1468 = vmatpush1.bf16.msra.mxu0 0
    %1469 = vmatprep.mubr.bf16.mxu0 0
    %1470 = vmatmul.mubr.bf16.gmra.mrb[0].mxu0 %v1435
    %v1471 = vpop.f32.mrb[0].mxu0
    %v1472 = vadd.f32 0.0, %v1471
    %v1473 = vpop.f32.mrb[0].mxu0
    %v1474 = vadd.f32 0.0, %v1473
    %v1475 = vpop.f32.mrb[0].mxu0
    %v1476 = vpop.f32.mrb[0].mxu0
    %1477 = vdwg.mxu0
    %v1479 = vsel %vm271, %v1354, 0
    %1481 = vmatprep.subr.bf16.mxu0 %v466
    %1482 = vmatpush1.bf16.msra.mxu0 %v465
    %1483 = vmatprep.subr.bf16.mxu0 %v468
    %1484 = vmatpush1.bf16.msra.mxu0 %v467
    %1485 = vmatprep.subr.bf16.mxu0 %v470
    %1486 = vmatpush1.bf16.msra.mxu0 %v469
    %1487 = vmatprep.subr.bf16.mxu0 %v472
    %1488 = vmatpush1.bf16.msra.mxu0 %v471
    %1489 = vmatprep.subr.bf16.mxu0 0
    %1490 = vmatpush1.bf16.msra.mxu0 0
    %1491 = vmatprep.subr.bf16.mxu0 0
    %1492 = vmatpush1.bf16.msra.mxu0 0
    %1493 = vmatprep.subr.bf16.mxu0 0
    %1494 = vmatpush1.bf16.msra.mxu0 0
    %1495 = vmatprep.subr.bf16.mxu0 0
    %1496 = vmatpush1.bf16.msra.mxu0 0
    %1497 = vmatprep.subr.bf16.mxu0 0
    %1498 = vmatpush1.bf16.msra.mxu0 0
    %1499 = vmatprep.subr.bf16.mxu0 0
    %1500 = vmatpush1.bf16.msra.mxu0 0
    %1501 = vmatprep.subr.bf16.mxu0 0
    %1502 = vmatpush1.bf16.msra.mxu0 0
    %1503 = vmatprep.subr.bf16.mxu0 0
    %1504 = vmatpush1.bf16.msra.mxu0 0
    %1505 = vmatprep.subr.bf16.mxu0 0
    %1506 = vmatpush1.bf16.msra.mxu0 0
    %1507 = vmatprep.subr.bf16.mxu0 0
    %1508 = vmatpush1.bf16.msra.mxu0 0
    %1509 = vmatprep.subr.bf16.mxu0 0
    %1510 = vmatpush1.bf16.msra.mxu0 0
    %1511 = vmatprep.subr.bf16.mxu0 0
    %1512 = vmatpush1.bf16.msra.mxu0 0
    %1513 = vmatprep.mubr.bf16.mxu0 0
    %1514 = vmatmul.mubr.bf16.gmra.mrb[0].mxu0 %v1479
    %v1515 = vpop.f32.mrb[0].mxu0
    %v1516 = vadd.f32 %v1472, %v1515
    %v1517 = vpop.f32.mrb[0].mxu0
    %v1518 = vadd.f32 %v1474, %v1517
    %v1519 = vpop.f32.mrb[0].mxu0
    %v1520 = vpop.f32.mrb[0].mxu0
    %1521 = vdwg.mxu0
    %v1522 = vadd.f32 %v1516, %v203
    %v1523 = vadd.f32 %v1518, %v207
    %v1524 = vxor.u32 %v1522, 2147483648
    %v1525 = vxor.u32 %v1523, 2147483648
    %v1526 = vmul.f32 %v1524, 1.442695
    %v1527 = vpow.pop %v1526
    %v1528 = vmul.f32 %v1525, 1.442695
    %v1529 = vpow.pop %v1528
    %v1530 = vadd.f32 %v1527, 1.0
    %v1531 = vadd.f32 %v1529, 1.0
    %v1532 = vrcp.pop %v1530
    %v1533 = vmul.f32 1.0, %v1532
    %v1534 = vrcp.pop %v1531
    %v1535 = vmul.f32 1.0, %v1534
    %v1536 = vtanh.pop %v1523
    %v1537 = vmul.f32 %v1533, %v1347
    %1539 = vrot.lane.b32.xlu0 %v1536, 64
    %v1540 = vpop.permute.xlu0 %1539
    %v1542 = vmul.f32 %v1533, %v1540
    %1544 = vrot.lane.b32.xlu0 %v1542, 64
    %v1545 = vpop.permute.xlu0 %1544
    %v1547 = vadd.f32 %v1537, %v1545
    %v1548 = vtanh.pop %v1547
    %1550 = vrot.lane.b32.xlu0 %v1548, 64
    %v1551 = vpop.permute.xlu0 %1550
    %v1553 = vmul.f32 %v1535, %v1551
    %v1554 = vpack.c.bf16 %v1553, %v1553
    %s1555 = smul.u32 6, 2
    %s1556 = smul.addr %s1555, 8
    %s1557 = scalar_lea.vmem [#allocation2], %s1556
    %v1558 = vld [vmem:[%s1557] sm:$0xff]
    %v1559 = vld [vmem:[%s1557 + $0x8] sm:$0xff]
    %1560 = vmatprep.subr.bf16.mxu0 %v256
    %1561 = vmatpush1.bf16.msra.mxu0 %v255
    %1562 = vmatprep.subr.bf16.mxu0 %v258
    %1563 = vmatpush1.bf16.msra.mxu0 %v257
    %1564 = vmatprep.subr.bf16.mxu0 %v260
    %1565 = vmatpush1.bf16.msra.mxu0 %v259
    %1566 = vmatprep.subr.bf16.mxu0 %v262
    %1567 = vmatpush1.bf16.msra.mxu0 %v261
    %1568 = vmatprep.subr.bf16.mxu0 0
    %1569 = vmatpush1.bf16.msra.mxu0 0
    %1570 = vmatprep.subr.bf16.mxu0 0
    %1571 = vmatpush1.bf16.msra.mxu0 0
    %1572 = vmatprep.subr.bf16.mxu0 0
    %1573 = vmatpush1.bf16.msra.mxu0 0
    %1574 = vmatprep.subr.bf16.mxu0 0
    %1575 = vmatpush1.bf16.msra.mxu0 0
    %1576 = vmatprep.subr.bf16.mxu0 0
    %1577 = vmatpush1.bf16.msra.mxu0 0
    %1578 = vmatprep.subr.bf16.mxu0 0
    %1579 = vmatpush1.bf16.msra.mxu0 0
    %1580 = vmatprep.subr.bf16.mxu0 0
    %1581 = vmatpush1.bf16.msra.mxu0 0
    %1582 = vmatprep.subr.bf16.mxu0 0
    %1583 = vmatpush1.bf16.msra.mxu0 0
    %1584 = vmatprep.subr.bf16.mxu0 0
    %1585 = vmatpush1.bf16.msra.mxu0 0
    %1586 = vmatprep.subr.bf16.mxu0 0
    %1587 = vmatpush1.bf16.msra.mxu0 0
    %1588 = vmatprep.subr.bf16.mxu0 0
    %1589 = vmatpush1.bf16.msra.mxu0 0
    %1590 = vmatprep.subr.bf16.mxu0 0
    %1591 = vmatpush1.bf16.msra.mxu0 0
    %1592 = vmatprep.mubr.bf16.mxu0 0
    %1593 = vmatmul.mubr.bf16.gmra.mrb[0].mxu0 %v1435
    %v1594 = vpop.f32.mrb[0].mxu0
    %v1595 = vadd.f32 0.0, %v1594
    %v1596 = vpop.f32.mrb[0].mxu0
    %v1597 = vadd.f32 0.0, %v1596
    %v1598 = vpop.f32.mrb[0].mxu0
    %v1599 = vpop.f32.mrb[0].mxu0
    %1600 = vdwg.mxu0
    %v1601 = vadd.f32 %v1558, %v1595
    %v1602 = vadd.f32 %v1559, %v1597
    %v1603 = vxor.u32 %v1601, 2147483648
    %v1604 = vxor.u32 %v1602, 2147483648
    %v1605 = vmul.f32 %v1603, 1.442695
    %v1606 = vpow.pop %v1605
    %v1607 = vmul.f32 %v1604, 1.442695
    %v1608 = vpow.pop %v1607
    %v1609 = vadd.f32 %v1606, 1.0
    %v1610 = vadd.f32 %v1608, 1.0
    %v1611 = vrcp.pop %v1609
    %v1612 = vmul.f32 1.0, %v1611
    %v1613 = vrcp.pop %v1610
    %v1614 = vmul.f32 1.0, %v1613
    %v1615 = vtanh.pop %v1602
    %v1616 = vmul.f32 %v1612, %v1426
    %1618 = vrot.lane.b32.xlu0 %v1615, 64
    %v1619 = vpop.permute.xlu0 %1618
    %v1621 = vmul.f32 %v1612, %v1619
    %1623 = vrot.lane.b32.xlu0 %v1621, 64
    %v1624 = vpop.permute.xlu0 %1623
    %v1626 = vadd.f32 %v1616, %v1624
    %v1627 = vtanh.pop %v1626
    %1629 = vrot.lane.b32.xlu0 %v1627, 64
    %v1630 = vpop.permute.xlu0 %1629
    %v1632 = vmul.f32 %v1614, %v1630
    %v1633 = vpack.c.bf16 %v1632, %v1632
    %v1635 = vsel %vm271, %v1633, 0
    %1637 = vmatprep.subr.bf16.mxu0 %v382
    %1638 = vmatpush1.bf16.msra.mxu0 %v381
    %1639 = vmatprep.subr.bf16.mxu0 %v384
    %1640 = vmatpush1.bf16.msra.mxu0 %v383
    %1641 = vmatprep.subr.bf16.mxu0 %v386
    %1642 = vmatpush1.bf16.msra.mxu0 %v385
    %1643 = vmatprep.subr.bf16.mxu0 %v388
    %1644 = vmatpush1.bf16.msra.mxu0 %v387
    %1645 = vmatprep.subr.bf16.mxu0 0
    %1646 = vmatpush1.bf16.msra.mxu0 0
    %1647 = vmatprep.subr.bf16.mxu0 0
    %1648 = vmatpush1.bf16.msra.mxu0 0
    %1649 = vmatprep.subr.bf16.mxu0 0
    %1650 = vmatpush1.bf16.msra.mxu0 0
    %1651 = vmatprep.subr.bf16.mxu0 0
    %1652 = vmatpush1.bf16.msra.mxu0 0
    %1653 = vmatprep.subr.bf16.mxu0 0
    %1654 = vmatpush1.bf16.msra.mxu0 0
    %1655 = vmatprep.subr.bf16.mxu0 0
    %1656 = vmatpush1.bf16.msra.mxu0 0
    %1657 = vmatprep.subr.bf16.mxu0 0
    %1658 = vmatpush1.bf16.msra.mxu0 0
    %1659 = vmatprep.subr.bf16.mxu0 0
    %1660 = vmatpush1.bf16.msra.mxu0 0
    %1661 = vmatprep.subr.bf16.mxu0 0
    %1662 = vmatpush1.bf16.msra.mxu0 0
    %1663 = vmatprep.subr.bf16.mxu0 0
    %1664 = vmatpush1.bf16.msra.mxu0 0
    %1665 = vmatprep.subr.bf16.mxu0 0
    %1666 = vmatpush1.bf16.msra.mxu0 0
    %1667 = vmatprep.subr.bf16.mxu0 0
    %1668 = vmatpush1.bf16.msra.mxu0 0
    %1669 = vmatprep.mubr.bf16.mxu0 0
    %1670 = vmatmul.mubr.bf16.gmra.mrb[0].mxu0 %v1635
    %v1671 = vpop.f32.mrb[0].mxu0
    %v1672 = vadd.f32 0.0, %v1671
    %v1673 = vpop.f32.mrb[0].mxu0
    %v1674 = vadd.f32 0.0, %v1673
    %v1675 = vpop.f32.mrb[0].mxu0
    %v1676 = vpop.f32.mrb[0].mxu0
    %1677 = vdwg.mxu0
    %v1679 = vsel %vm271, %v1554, 0
    %1681 = vmatprep.subr.bf16.mxu0 %v466
    %1682 = vmatpush1.bf16.msra.mxu0 %v465
    %1683 = vmatprep.subr.bf16.mxu0 %v468
    %1684 = vmatpush1.bf16.msra.mxu0 %v467
    %1685 = vmatprep.subr.bf16.mxu0 %v470
    %1686 = vmatpush1.bf16.msra.mxu0 %v469
    %1687 = vmatprep.subr.bf16.mxu0 %v472
    %1688 = vmatpush1.bf16.msra.mxu0 %v471
    %1689 = vmatprep.subr.bf16.mxu0 0
    %1690 = vmatpush1.bf16.msra.mxu0 0
    %1691 = vmatprep.subr.bf16.mxu0 0
    %1692 = vmatpush1.bf16.msra.mxu0 0
    %1693 = vmatprep.subr.bf16.mxu0 0
    %1694 = vmatpush1.bf16.msra.mxu0 0
    %1695 = vmatprep.subr.bf16.mxu0 0
    %1696 = vmatpush1.bf16.msra.mxu0 0
    %1697 = vmatprep.subr.bf16.mxu0 0
    %1698 = vmatpush1.bf16.msra.mxu0 0
    %1699 = vmatprep.subr.bf16.mxu0 0
    %1700 = vmatpush1.bf16.msra.mxu0 0
    %1701 = vmatprep.subr.bf16.mxu0 0
    %1702 = vmatpush1.bf16.msra.mxu0 0
    %1703 = vmatprep.subr.bf16.mxu0 0
    %1704 = vmatpush1.bf16.msra.mxu0 0
    %1705 = vmatprep.subr.bf16.mxu0 0
    %1706 = vmatpush1.bf16.msra.mxu0 0
    %1707 = vmatprep.subr.bf16.mxu0 0
    %1708 = vmatpush1.bf16.msra.mxu0 0
    %1709 = vmatprep.subr.bf16.mxu0 0
    %1710 = vmatpush1.bf16.msra.mxu0 0
    %1711 = vmatprep.subr.bf16.mxu0 0
    %1712 = vmatpush1.bf16.msra.mxu0 0
    %1713 = vmatprep.mubr.bf16.mxu0 0
    %1714 = vmatmul.mubr.bf16.gmra.mrb[0].mxu0 %v1679
    %v1715 = vpop.f32.mrb[0].mxu0
    %v1716 = vadd.f32 %v1672, %v1715
    %v1717 = vpop.f32.mrb[0].mxu0
    %v1718 = vadd.f32 %v1674, %v1717
    %v1719 = vpop.f32.mrb[0].mxu0
    %v1720 = vpop.f32.mrb[0].mxu0
    %1721 = vdwg.mxu0
    %v1722 = vadd.f32 %v1716, %v203
    %v1723 = vadd.f32 %v1718, %v207
    %v1724 = vxor.u32 %v1722, 2147483648
    %v1725 = vxor.u32 %v1723, 2147483648
    %v1726 = vmul.f32 %v1724, 1.442695
    %v1727 = vpow.pop %v1726
    %v1728 = vmul.f32 %v1725, 1.442695
    %v1729 = vpow.pop %v1728
    %v1730 = vadd.f32 %v1727, 1.0
    %v1731 = vadd.f32 %v1729, 1.0
    %v1732 = vrcp.pop %v1730
    %v1733 = vmul.f32 1.0, %v1732
    %v1734 = vrcp.pop %v1731
    %v1735 = vmul.f32 1.0, %v1734
    %v1736 = vtanh.pop %v1723
    %v1737 = vmul.f32 %v1733, %v1547
    %1739 = vrot.lane.b32.xlu0 %v1736, 64
    %v1740 = vpop.permute.xlu0 %1739
    %v1742 = vmul.f32 %v1733, %v1740
    %1744 = vrot.lane.b32.xlu0 %v1742, 64
    %v1745 = vpop.permute.xlu0 %1744
    %v1747 = vadd.f32 %v1737, %v1745
    %v1748 = vtanh.pop %v1747
    %1750 = vrot.lane.b32.xlu0 %v1748, 64
    %v1751 = vpop.permute.xlu0 %1750
    %v1753 = vmul.f32 %v1735, %v1751
    %v1754 = vpack.c.bf16 %v1753, %v1753
    %s1755 = smul.u32 7, 2
    %s1756 = smul.addr %s1755, 8
    %s1757 = scalar_lea.vmem [#allocation2], %s1756
    %v1758 = vld [vmem:[%s1757] sm:$0xff]
    %v1759 = vld [vmem:[%s1757 + $0x8] sm:$0xff]
    %1760 = vmatprep.subr.bf16.mxu0 %v256
    %1761 = vmatpush1.bf16.msra.mxu0 %v255
    %1762 = vmatprep.subr.bf16.mxu0 %v258
    %1763 = vmatpush1.bf16.msra.mxu0 %v257
    %1764 = vmatprep.subr.bf16.mxu0 %v260
    %1765 = vmatpush1.bf16.msra.mxu0 %v259
    %1766 = vmatprep.subr.bf16.mxu0 %v262
    %1767 = vmatpush1.bf16.msra.mxu0 %v261
    %1768 = vmatprep.subr.bf16.mxu0 0
    %1769 = vmatpush1.bf16.msra.mxu0 0
    %1770 = vmatprep.subr.bf16.mxu0 0
    %1771 = vmatpush1.bf16.msra.mxu0 0
    %1772 = vmatprep.subr.bf16.mxu0 0
    %1773 = vmatpush1.bf16.msra.mxu0 0
    %1774 = vmatprep.subr.bf16.mxu0 0
    %1775 = vmatpush1.bf16.msra.mxu0 0
    %1776 = vmatprep.subr.bf16.mxu0 0
    %1777 = vmatpush1.bf16.msra.mxu0 0
    %1778 = vmatprep.subr.bf16.mxu0 0
    %1779 = vmatpush1.bf16.msra.mxu0 0
    %1780 = vmatprep.subr.bf16.mxu0 0
    %1781 = vmatpush1.bf16.msra.mxu0 0
    %1782 = vmatprep.subr.bf16.mxu0 0
    %1783 = vmatpush1.bf16.msra.mxu0 0
    %1784 = vmatprep.subr.bf16.mxu0 0
    %1785 = vmatpush1.bf16.msra.mxu0 0
    %1786 = vmatprep.subr.bf16.mxu0 0
    %1787 = vmatpush1.bf16.msra.mxu0 0
    %1788 = vmatprep.subr.bf16.mxu0 0
    %1789 = vmatpush1.bf16.msra.mxu0 0
    %1790 = vmatprep.subr.bf16.mxu0 0
    %1791 = vmatpush1.bf16.msra.mxu0 0
    %1792 = vmatprep.mubr.bf16.mxu0 0
    %1793 = vmatmul.mubr.bf16.gmra.mrb[0].mxu0 %v1635
    %v1794 = vpop.f32.mrb[0].mxu0
    %v1795 = vadd.f32 0.0, %v1794
    %v1796 = vpop.f32.mrb[0].mxu0
    %v1797 = vadd.f32 0.0, %v1796
    %v1798 = vpop.f32.mrb[0].mxu0
    %v1799 = vpop.f32.mrb[0].mxu0
    %1800 = vdwg.mxu0
    %v1801 = vadd.f32 %v1758, %v1795
    %v1802 = vadd.f32 %v1759, %v1797
    %v1803 = vxor.u32 %v1801, 2147483648
    %v1804 = vxor.u32 %v1802, 2147483648
    %v1805 = vmul.f32 %v1803, 1.442695
    %v1806 = vpow.pop %v1805
    %v1807 = vmul.f32 %v1804, 1.442695
    %v1808 = vpow.pop %v1807
    %v1809 = vadd.f32 %v1806, 1.0
    %v1810 = vadd.f32 %v1808, 1.0
    %v1811 = vrcp.pop %v1809
    %v1812 = vmul.f32 1.0, %v1811
    %v1813 = vrcp.pop %v1810
    %v1814 = vmul.f32 1.0, %v1813
    %v1815 = vtanh.pop %v1802
    %v1816 = vmul.f32 %v1812, %v1626
    %1818 = vrot.lane.b32.xlu0 %v1815, 64
    %v1819 = vpop.permute.xlu0 %1818
    %v1821 = vmul.f32 %v1812, %v1819
    %1823 = vrot.lane.b32.xlu0 %v1821, 64
    %v1824 = vpop.permute.xlu0 %1823
    %v1826 = vadd.f32 %v1816, %v1824
    %v1827 = vtanh.pop %v1826
    %1829 = vrot.lane.b32.xlu0 %v1827, 64
    %v1830 = vpop.permute.xlu0 %1829
    %v1832 = vmul.f32 %v1814, %v1830
    %v1833 = vpack.c.bf16 %v1832, %v1832
    %v1835 = vsel %vm271, %v1833, 0
    %1837 = vmatprep.subr.bf16.mxu0 %v382
    %1838 = vmatpush1.bf16.msra.mxu0 %v381
    %1839 = vmatprep.subr.bf16.mxu0 %v384
    %1840 = vmatpush1.bf16.msra.mxu0 %v383
    %1841 = vmatprep.subr.bf16.mxu0 %v386
    %1842 = vmatpush1.bf16.msra.mxu0 %v385
    %1843 = vmatprep.subr.bf16.mxu0 %v388
    %1844 = vmatpush1.bf16.msra.mxu0 %v387
    %1845 = vmatprep.subr.bf16.mxu0 0
    %1846 = vmatpush1.bf16.msra.mxu0 0
    %1847 = vmatprep.subr.bf16.mxu0 0
    %1848 = vmatpush1.bf16.msra.mxu0 0
    %1849 = vmatprep.subr.bf16.mxu0 0
    %1850 = vmatpush1.bf16.msra.mxu0 0
    %1851 = vmatprep.subr.bf16.mxu0 0
    %1852 = vmatpush1.bf16.msra.mxu0 0
    %1853 = vmatprep.subr.bf16.mxu0 0
    %1854 = vmatpush1.bf16.msra.mxu0 0
    %1855 = vmatprep.subr.bf16.mxu0 0
    %1856 = vmatpush1.bf16.msra.mxu0 0
    %1857 = vmatprep.subr.bf16.mxu0 0
    %1858 = vmatpush1.bf16.msra.mxu0 0
    %1859 = vmatprep.subr.bf16.mxu0 0
    %1860 = vmatpush1.bf16.msra.mxu0 0
    %1861 = vmatprep.subr.bf16.mxu0 0
    %1862 = vmatpush1.bf16.msra.mxu0 0
    %1863 = vmatprep.subr.bf16.mxu0 0
    %1864 = vmatpush1.bf16.msra.mxu0 0
    %1865 = vmatprep.subr.bf16.mxu0 0
    %1866 = vmatpush1.bf16.msra.mxu0 0
    %1867 = vmatprep.subr.bf16.mxu0 0
    %1868 = vmatpush1.bf16.msra.mxu0 0
    %1869 = vmatprep.mubr.bf16.mxu0 0
    %1870 = vmatmul.mubr.bf16.gmra.mrb[0].mxu0 %v1835
    %v1871 = vpop.f32.mrb[0].mxu0
    %v1872 = vadd.f32 0.0, %v1871
    %v1873 = vpop.f32.mrb[0].mxu0
    %v1874 = vadd.f32 0.0, %v1873
    %v1875 = vpop.f32.mrb[0].mxu0
    %v1876 = vpop.f32.mrb[0].mxu0
    %1877 = vdwg.mxu0
    %v1879 = vsel %vm271, %v1754, 0
    %1881 = vmatprep.subr.bf16.mxu0 %v466
    %1882 = vmatpush1.bf16.msra.mxu0 %v465
    %1883 = vmatprep.subr.bf16.mxu0 %v468
    %1884 = vmatpush1.bf16.msra.mxu0 %v467
    %1885 = vmatprep.subr.bf16.mxu0 %v470
    %1886 = vmatpush1.bf16.msra.mxu0 %v469
    %1887 = vmatprep.subr.bf16.mxu0 %v472
    %1888 = vmatpush1.bf16.msra.mxu0 %v471
    %1889 = vmatprep.subr.bf16.mxu0 0
    %1890 = vmatpush1.bf16.msra.mxu0 0
    %1891 = vmatprep.subr.bf16.mxu0 0
    %1892 = vmatpush1.bf16.msra.mxu0 0
    %1893 = vmatprep.subr.bf16.mxu0 0
    %1894 = vmatpush1.bf16.msra.mxu0 0
    %1895 = vmatprep.subr.bf16.mxu0 0
    %1896 = vmatpush1.bf16.msra.mxu0 0
    %1897 = vmatprep.subr.bf16.mxu0 0
    %1898 = vmatpush1.bf16.msra.mxu0 0
    %1899 = vmatprep.subr.bf16.mxu0 0
    %1900 = vmatpush1.bf16.msra.mxu0 0
    %1901 = vmatprep.subr.bf16.mxu0 0
    %1902 = vmatpush1.bf16.msra.mxu0 0
    %1903 = vmatprep.subr.bf16.mxu0 0
    %1904 = vmatpush1.bf16.msra.mxu0 0
    %1905 = vmatprep.subr.bf16.mxu0 0
    %1906 = vmatpush1.bf16.msra.mxu0 0
    %1907 = vmatprep.subr.bf16.mxu0 0
    %1908 = vmatpush1.bf16.msra.mxu0 0
    %1909 = vmatprep.subr.bf16.mxu0 0
    %1910 = vmatpush1.bf16.msra.mxu0 0
    %1911 = vmatprep.subr.bf16.mxu0 0
    %1912 = vmatpush1.bf16.msra.mxu0 0
    %1913 = vmatprep.mubr.bf16.mxu0 0
    %1914 = vmatmul.mubr.bf16.gmra.mrb[0].mxu0 %v1879
    %v1915 = vpop.f32.mrb[0].mxu0
    %v1916 = vadd.f32 %v1872, %v1915
    %v1917 = vpop.f32.mrb[0].mxu0
    %v1918 = vadd.f32 %v1874, %v1917
    %v1919 = vpop.f32.mrb[0].mxu0
    %v1920 = vpop.f32.mrb[0].mxu0
    %1921 = vdwg.mxu0
    %v1922 = vadd.f32 %v1916, %v203
    %v1923 = vadd.f32 %v1918, %v207
    %v1924 = vxor.u32 %v1922, 2147483648
    %v1925 = vxor.u32 %v1923, 2147483648
    %v1926 = vmul.f32 %v1924, 1.442695
    %v1927 = vpow.pop %v1926
    %v1928 = vmul.f32 %v1925, 1.442695
    %v1929 = vpow.pop %v1928
    %v1930 = vadd.f32 %v1927, 1.0
    %v1931 = vadd.f32 %v1929, 1.0
    %v1932 = vrcp.pop %v1930
    %v1933 = vmul.f32 1.0, %v1932
    %v1934 = vrcp.pop %v1931
    %v1935 = vmul.f32 1.0, %v1934
    %v1936 = vtanh.pop %v1923
    %v1937 = vmul.f32 %v1933, %v1747
    %1939 = vrot.lane.b32.xlu0 %v1936, 64
    %v1940 = vpop.permute.xlu0 %1939
    %v1942 = vmul.f32 %v1933, %v1940
    %1944 = vrot.lane.b32.xlu0 %v1942, 64
    %v1945 = vpop.permute.xlu0 %1944
    %v1947 = vadd.f32 %v1937, %v1945
    %v1948 = vtanh.pop %v1947
    %1950 = vrot.lane.b32.xlu0 %v1948, 64
    %v1951 = vpop.permute.xlu0 %1950
    %v1953 = vmul.f32 %v1935, %v1951
    %v1954 = vpack.c.bf16 %v1953, %v1953
    %v1955 = vld [vmem:[%s7] sm:$0xf]
    %v1956 = vld [vmem:[%s7 + $0x4] sm:$0xf]
    %v1957 = vld [vmem:[%s7 + $0x8] sm:$0xf]
    %v1958 = vld [vmem:[%s7 + $0xc] sm:$0xf]
    %v1959 = vld [vmem:[%s7 + $0x10] sm:$0xf]
    %v1960 = vld [vmem:[%s7 + $0x14] sm:$0xf]
    %v1961 = vld [vmem:[%s7 + $0x18] sm:$0xf]
    %v1962 = vld [vmem:[%s7 + $0x1c] sm:$0xf]
    %v1963 = vld [vmem:[%s8] sm:$0x1]
    %v1965 = vlaneseq
    %v1966 = vshrl.u32 %v1965, 7
    %v1967 = vsub.s32 0, %v1966
    %v1968 = vrot.slane %v1963, %v1967
    %v1978 = vunpack.c.l.b16 %v1955
    %v1979 = vunpack.c.l.b16 %v1956
    %v1980 = vunpack.c.l.b16 %v1957
    %v1981 = vunpack.c.l.b16 %v1958
    %v1982 = vunpack.c.l.b16 %v1959
    %v1983 = vunpack.c.l.b16 %v1960
    %v1984 = vunpack.c.l.b16 %v1961
    %v1985 = vunpack.c.l.b16 %v1962
    %v1986 = vpack.c.b16 %v1979, %v1978
    %v1987 = vpack.c.b16 %v1981, %v1980
    %v1988 = vpack.c.b16 %v1983, %v1982
    %v1989 = vpack.c.b16 %v1985, %v1984
    %v1995 = vsel %vm271, %v1954, 0
    %1997 = vmatprep.subr.bf16.mxu0 0
    %1998 = vmatpush1.bf16.msra.mxu0 %v1986
    %1999 = vmatprep.subr.bf16.mxu0 0
    %2000 = vmatpush1.bf16.msra.mxu0 %v1987
    %2001 = vmatprep.subr.bf16.mxu0 0
    %2002 = vmatpush1.bf16.msra.mxu0 %v1988
    %2003 = vmatprep.subr.bf16.mxu0 0
    %2004 = vmatpush1.bf16.msra.mxu0 %v1989
    %2005 = vmatprep.subr.bf16.mxu0 0
    %2006 = vmatpush1.bf16.msra.mxu0 0
    %2007 = vmatprep.subr.bf16.mxu0 0
    %2008 = vmatpush1.bf16.msra.mxu0 0
    %2009 = vmatprep.subr.bf16.mxu0 0
    %2010 = vmatpush1.bf16.msra.mxu0 0
    %2011 = vmatprep.subr.bf16.mxu0 0
    %2012 = vmatpush1.bf16.msra.mxu0 0
    %2013 = vmatprep.subr.bf16.mxu0 0
    %2014 = vmatpush1.bf16.msra.mxu0 0
    %2015 = vmatprep.subr.bf16.mxu0 0
    %2016 = vmatpush1.bf16.msra.mxu0 0
    %2017 = vmatprep.subr.bf16.mxu0 0
    %2018 = vmatpush1.bf16.msra.mxu0 0
    %2019 = vmatprep.subr.bf16.mxu0 0
    %2020 = vmatpush1.bf16.msra.mxu0 0
    %2021 = vmatprep.subr.bf16.mxu0 0
    %2022 = vmatpush1.bf16.msra.mxu0 0
    %2023 = vmatprep.subr.bf16.mxu0 0
    %2024 = vmatpush1.bf16.msra.mxu0 0
    %2025 = vmatprep.subr.bf16.mxu0 0
    %2026 = vmatpush1.bf16.msra.mxu0 0
    %2027 = vmatprep.subr.bf16.mxu0 0
    %2028 = vmatpush1.bf16.msra.mxu0 0
    %2029 = vmatprep.mubr.bf16.mxu0 0
    %2030 = vmatmul.mubr.bf16.gmra.mrb[0].mxu0 %v1995
    %v2031 = vpop.f32.mrb[0].mxu0
    %v2032 = vadd.f32 %v1968, %v2031
    %v2033 = vpop.f32.mrb[0].mxu0
    %v2034 = vpop.f32.mrb[0].mxu0
    %v2035 = vpop.f32.mrb[0].mxu0
    %2036 = vdwg.mxu0
    %2037 = vst [vmem:[%s9] sm:$0xff] %v2032
    // Predicated region
    $region46: #{lstm_model_forward.1} parent=1 // pred_check
      _
    $region47: #{lstm_model_forward.1} parent=1 // pred_check_branch
      %2039 = sbr.rel (0) target = $region49
    $region48: #{lstm_model_forward.1} parent=1 // pred_region
      _
    $region49: #{lstm_model_forward.1} parent=1 // pred_fallthru
      _
    // Predicated region
    $region50: #{lstm_model_forward.1} parent=1 // pred_check
      _
    $region51: #{lstm_model_forward.1} parent=1 // pred_check_branch
      %2041 = sbr.rel (0) target = $region53
    $region52: #{lstm_model_forward.1} parent=1 // pred_region
      _
    $region53: #{lstm_model_forward.1} parent=1 // pred_fallthru
      _
    %2042 = vsyncpa [#allocation4], 1
    %2043 = vsyncpa [#allocation6], 1

</llo_original>
